<compile_context>
chip_gen: v7x
topology: tpu7x:2x2x1
jax: 0.10.0
libtpu: 0.0.40
codegen_flags: <defaults>
</compile_context>

<pallas_src>
import functools

import jax
import jax.numpy as jnp
from jax.experimental import pallas as pl
from jax.experimental.pallas import tpu as pltpu

LANE = 128  # lane pad for F/H/C and minimum row/col tile of A


# ---------------------------------------------------------------------------
# Layer 1: h = relu(A@X * 1/deg @ w1l + X @ w1r + b1); emit p = h@w2l, q = h@w2r
# ---------------------------------------------------------------------------
def layer1_kernel(a_ref, xk_ref, xi_ref, invdeg_ref, w1l_ref, w1r_ref, b1_ref,
                  w2l_ref, w2r_ref, p_ref, q_ref, acc_ref):
    k = pl.program_id(1)

    @pl.when(k == 0)
    def _():
        acc_ref[...] = jnp.zeros_like(acc_ref)

    # int8 0/1 A upcast to bf16 just before the MXU dot; f32 accumulation of
    # the (unnormalized) neighbor sum is exact.
    a = a_ref[...].astype(jnp.bfloat16)
    acc_ref[...] += jnp.dot(a, xk_ref[...], preferred_element_type=jnp.float32)

    @pl.when(k == pl.num_programs(1) - 1)
    def _():
        # exact f32 mean: per-row 1/deg applied after the bf16 matmul
        agg = (acc_ref[...] * invdeg_ref[...]).astype(jnp.bfloat16)  # [TM, Fp]
        # two dots summed in f32 (same MXU work as the fused concat, no
        # [TM, 2*Fp] lane-axis staging copy)
        h = (jnp.dot(agg, w1l_ref[...], preferred_element_type=jnp.float32)
             + jnp.dot(xi_ref[...], w1r_ref[...],
                       preferred_element_type=jnp.float32)
             + b1_ref[...])
        h16 = jnp.maximum(h, 0.0).astype(jnp.bfloat16)               # relu
        # reassociated layer 2: push h through the small weights now
        p_ref[...] = jnp.dot(h16, w2l_ref[...],
                             preferred_element_type=jnp.float32
                             ).astype(jnp.bfloat16)                  # [TM, Cp]
        q_ref[...] = jnp.dot(h16, w2r_ref[...],
                             preferred_element_type=jnp.float32
                             ).astype(jnp.bfloat16)                  # [TM, Cp]


# ---------------------------------------------------------------------------
# Layer 2: z = (A @ p) * 1/deg + q + b2 ; out = masked log_softmax(z)
# ---------------------------------------------------------------------------
def layer2_kernel(a_ref, pk_ref, qi_ref, invdeg_ref, b2_ref, out_ref, acc_ref,
                  *, num_classes):
    k = pl.program_id(1)

    @pl.when(k == 0)
    def _():
        acc_ref[...] = jnp.zeros_like(acc_ref)

    a = a_ref[...].astype(jnp.bfloat16)
    acc_ref[...] += jnp.dot(a, pk_ref[...], preferred_element_type=jnp.float32)

    @pl.when(k == pl.num_programs(1) - 1)
    def _():
        z = (acc_ref[...] * invdeg_ref[...]
             + qi_ref[...].astype(jnp.float32) + b2_ref[...])
        # mask padded class columns so they don't affect max / sum
        col = jax.lax.broadcasted_iota(jnp.int32, z.shape, 1)
        valid = col < num_classes
        zm = jnp.where(valid, z, -jnp.inf)
        z_max = jnp.max(zm, axis=1, keepdims=True)
        ez = jnp.where(valid, jnp.exp(zm - z_max), 0.0)
        lse = jnp.log(jnp.sum(ez, axis=1, keepdims=True))
        out_ref[...] = zm - z_max - lse


# ---------------------------------------------------------------------------
# Wrapper
# ---------------------------------------------------------------------------
def _pad_to(a, shape):
    return jnp.pad(a, [(0, s - d) for d, s in zip(a.shape, shape)])


def _round_up(n, m):
    return ((n + m - 1) // m) * m


def _select_tile(n):
    """Largest tile in {512, 256, 128} that still leaves >= 2 row blocks
    (keeps both v7x TensorCores busy via the 'parallel' grid axis)."""
    n128 = _round_up(n, LANE)
    for t in (512, 256, 128):
        if n128 >= 2 * t:
            return t
    return n128  # tiny graph: single block


def graphsage_forward(x, edge_index, params):
    """x: [N, F] f32, edge_index: [2, E] int32 (row 0 = src, row 1 = dst)."""
    n, f = x.shape
    h_dim = params["w1l"].shape[1]
    c = params["w2l"].shape[1]

    tile = _select_tile(n)
    tm = tk = tile
    n_pad = _round_up(n, tile)
    fp = _round_up(f, LANE)
    hp = _round_up(h_dim, LANE)
    cp = _round_up(c, LANE)
    grid = (n_pad // tm, n_pad // tk)

    # --- glue (not the hot path) --------------------------------------------
    src, dst = edge_index[0], edge_index[1]
    # exact f32 degrees from the edge list (no f32 N^2 intermediate)
    deg = jax.ops.segment_sum(jnp.ones_like(dst, jnp.float32), dst,
                              num_segments=n_pad)
    inv_deg = (1.0 / jnp.maximum(deg, 1.0)).reshape(n_pad, 1)
    # dense 0/1 adjacency stored directly as int8 (duplicate edges accumulate)
    adj = jnp.zeros((n_pad, n_pad), jnp.int8).at[dst, src].add(jnp.int8(1))

    # --- padded weights (bf16 matmul operands, f32 biases) -------------------
    x_p = _pad_to(x, (n_pad, fp)).astype(jnp.bfloat16)
    w1l = _pad_to(params["w1l"], (fp, hp)).astype(jnp.bfloat16)
    w1r = _pad_to(params["w1r"], (fp, hp)).astype(jnp.bfloat16)
    b1 = _pad_to(params["b1"], (1, hp)).astype(jnp.float32)
    w2l = _pad_to(params["w2l"], (hp, cp)).astype(jnp.bfloat16)
    w2r = _pad_to(params["w2r"], (hp, cp)).astype(jnp.bfloat16)
    b2 = _pad_to(params["b2"], (1, cp)).astype(jnp.float32)

    cparams = pltpu.CompilerParams(
        dimension_semantics=("parallel", "arbitrary"),
        vmem_limit_bytes=32 * 1024 * 1024,  # safe on v5e/v6e/v7x; >> working set
    )

    # ------------------------------ layer 1 ---------------------------------
    p, q = pl.pallas_call(
        layer1_kernel,
        out_shape=(jax.ShapeDtypeStruct((n_pad, cp), jnp.bfloat16),
                   jax.ShapeDtypeStruct((n_pad, cp), jnp.bfloat16)),
        grid_spec=pltpu.PrefetchScalarGridSpec(
            num_scalar_prefetch=0,
            grid=grid,
            in_specs=[
                pl.BlockSpec((tm, tk), lambda i, k: (i, k)),      # A tile (int8)
                pl.BlockSpec((tk, fp), lambda i, k: (k, 0)),      # X col-block
                pl.BlockSpec((tm, fp), lambda i, k: (i, 0)),      # X row-block (self)
                pl.BlockSpec((tm, 1), lambda i, k: (i, 0)),       # 1/deg
                pl.BlockSpec((fp, hp), lambda i, k: (0, 0)),      # w1l
                pl.BlockSpec((fp, hp), lambda i, k: (0, 0)),      # w1r
                pl.BlockSpec((1, hp), lambda i, k: (0, 0)),       # b1
                pl.BlockSpec((hp, cp), lambda i, k: (0, 0)),      # w2l
                pl.BlockSpec((hp, cp), lambda i, k: (0, 0)),      # w2r
            ],
            out_specs=[pl.BlockSpec((tm, cp), lambda i, k: (i, 0)),
                       pl.BlockSpec((tm, cp), lambda i, k: (i, 0))],
            scratch_shapes=[pltpu.VMEM((tm, fp), jnp.float32)],
        ),
        compiler_params=cparams,
    )(adj, x_p, x_p, inv_deg, w1l, w1r, b1, w2l, w2r)

    # ------------------------------ layer 2 ---------------------------------
    out_pad = pl.pallas_call(
        functools.partial(layer2_kernel, num_classes=c),
        out_shape=jax.ShapeDtypeStruct((n_pad, cp), jnp.float32),
        grid_spec=pltpu.PrefetchScalarGridSpec(
            num_scalar_prefetch=0,
            grid=grid,
            in_specs=[
                pl.BlockSpec((tm, tk), lambda i, k: (i, k)),      # A tile (int8)
                pl.BlockSpec((tk, cp), lambda i, k: (k, 0)),      # p col-block
                pl.BlockSpec((tm, cp), lambda i, k: (i, 0)),      # q row-block
                pl.BlockSpec((tm, 1), lambda i, k: (i, 0)),       # 1/deg
                pl.BlockSpec((1, cp), lambda i, k: (0, 0)),       # b2
            ],
            out_specs=pl.BlockSpec((tm, cp), lambda i, k: (i, 0)),
            scratch_shapes=[pltpu.VMEM((tm, cp), jnp.float32)],
        ),
        compiler_params=cparams,
    )(adj, p, q, inv_deg, b2)

    return out_pad[:n, :c]


# ---------------------------------------------------------------------------
# Params + reference
# ---------------------------------------------------------------------------
def init_params(key, num_features, hidden, num_classes):
    ks = jax.random.split(key, 4)

    def glorot(k, fan_in, fan_out):
        s = jnp.sqrt(6.0 / (fan_in + fan_out))
        return jax.random.uniform(k, (fan_in, fan_out), jnp.float32, -s, s)

    return {
        "w1l": glorot(ks[0], num_features, hidden),
        "w1r": glorot(ks[1], num_features, hidden),
        "b1": jnp.zeros((1, hidden), jnp.float32),
        "w2l": glorot(ks[2], hidden, num_classes),
        "w2r": glorot(ks[3], hidden, num_classes),
        "b2": jnp.zeros((1, num_classes), jnp.float32),
    }


def reference_forward(x, edge_index, params):
    n = x.shape[0]
    src, dst = edge_index[0], edge_index[1]
    adj = jnp.zeros((n, n), jnp.float32).at[dst, src].add(1.0)
    a = adj / jnp.maximum(jnp.sum(adj, axis=1, keepdims=True), 1.0)
    h = jnp.maximum(a @ x @ params["w1l"] + params["b1"] + x @ params["w1r"], 0.0)
    z = a @ h @ params["w2l"] + params["b2"] + h @ params["w2r"]
    return jax.nn.log_softmax(z, axis=1)


if __name__ == "__main__":
    # nodes, features, sage_hidden, classes, edges
    # N=600 -> n_pad=768 with a 256 tile -> grid (3, 3): exercises the
    # larger-tile path while staying small.
    N, F, H, C, E = 600, 32, 64, 7, 3600

    key = jax.random.PRNGKey(0)
    kx, ke1, ke2, kp = jax.random.split(key, 4)

    x = jax.random.normal(kx, (N, F), jnp.float32)
    src = jax.random.randint(ke1, (E,), 0, N, jnp.int32)
    dst = jax.random.randint(ke2, (E,), 0, N, jnp.int32)
    edge_index = jnp.stack([src, dst], axis=0)

    params = init_params(kp, F, H, C)

    out = graphsage_forward(x, edge_index, params)
    out = jax.block_until_ready(out)

    assert out.shape == (N, C)
    # log_softmax rows must be normalized in prob space
    assert jnp.allclose(jnp.sum(jnp.exp(out), axis=1), 1.0, atol=1e-3)
    # bf16-matmul kernel vs f32 reference (loose tolerance for bf16 operands)
    ref = reference_forward(x, edge_index, params)
    assert jnp.allclose(out, ref, atol=1e-1), float(jnp.max(jnp.abs(out - ref)))
    print("KERNEL_OK")
</pallas_src>

<mosaic_0001>
module attributes {stable_mosaic.version = 11 : i64} {
  func.func @layer1_kernel(%arg0: i32, %arg1: i32, %arg2: memref<256x256xi8, #tpu.memory_space<vmem>>, %arg3: memref<256x128xbf16, #tpu.memory_space<vmem>>, %arg4: memref<256x128xbf16, #tpu.memory_space<vmem>>, %arg5: memref<256x1xf32, #tpu.memory_space<vmem>>, %arg6: memref<128x128xbf16, #tpu.memory_space<vmem>>, %arg7: memref<128x128xbf16, #tpu.memory_space<vmem>>, %arg8: memref<1x128xf32, #tpu.memory_space<vmem>>, %arg9: memref<128x128xbf16, #tpu.memory_space<vmem>>, %arg10: memref<128x128xbf16, #tpu.memory_space<vmem>>, %arg11: memref<256x128xbf16, #tpu.memory_space<vmem>>, %arg12: memref<256x128xbf16, #tpu.memory_space<vmem>>, %arg13: memref<256x128xf32, #tpu.memory_space<vmem>>) attributes {dimension_semantics = [#tpu.dimension_semantics<parallel>, #tpu.dimension_semantics<arbitrary>], iteration_bounds = array<i64: 3, 3>, scalar_prefetch = 0 : i64, scratch_operands = 1 : i64, tpu.core_type = #tpu.core_type<tc>, window_params = [{transform_indices = @transform_0, window_bounds = array<i64: 256, 256>}, {transform_indices = @transform_1, window_bounds = array<i64: 256, 128>}, {transform_indices = @transform_2, window_bounds = array<i64: 256, 128>}, {transform_indices = @transform_3, window_bounds = array<i64: 256, 1>}, {pipeline_mode = #tpu.pipeline_mode<synchronous>, transform_indices = @transform_4, window_bounds = array<i64: 128, 128>}, {pipeline_mode = #tpu.pipeline_mode<synchronous>, transform_indices = @transform_5, window_bounds = array<i64: 128, 128>}, {pipeline_mode = #tpu.pipeline_mode<synchronous>, transform_indices = @transform_6, window_bounds = array<i64: 1, 128>}, {pipeline_mode = #tpu.pipeline_mode<synchronous>, transform_indices = @transform_7, window_bounds = array<i64: 128, 128>}, {pipeline_mode = #tpu.pipeline_mode<synchronous>, transform_indices = @transform_8, window_bounds = array<i64: 128, 128>}, {transform_indices = @transform_9, window_bounds = array<i64: 256, 128>}, {transform_indices = @transform_10, window_bounds = array<i64: 256, 128>}]} {
    %c0_i32 = arith.constant 0 : i32
    %0 = arith.cmpi eq, %arg1, %c0_i32 : i32
    %1 = arith.extui %0 : i1 to i32
    %c0_i32_0 = arith.constant 0 : i32
    %2 = arith.cmpi ne, %1, %c0_i32_0 : i32
    scf.if %2 {
      %cst_9 = arith.constant 0.000000e+00 : f32
      %13 = vector.broadcast %cst_9 : f32 to vector<256x128xf32>
      %c0_10 = arith.constant 0 : index
      %c0_11 = arith.constant 0 : index
      %14 = vector.load %arg13[%c0_10, %c0_11] : memref<256x128xf32, #tpu.memory_space<vmem>>, vector<256x128xf32>
      tpu.vector_store %arg13[%c0_10, %c0_11], %13 {strides = array<i32>} : memref<256x128xf32, #tpu.memory_space<vmem>>, vector<256x128xf32>,
    } else {
    }
    %c0 = arith.constant 0 : index
    %c0_1 = arith.constant 0 : index
    %3 = vector.load %arg2[%c0, %c0_1] : memref<256x256xi8, #tpu.memory_space<vmem>>, vector<256x256xi8>
    %4 = arith.sitofp %3 : vector<256x256xi8> to vector<256x256xbf16>
    %c0_2 = arith.constant 0 : index
    %c0_3 = arith.constant 0 : index
    %5 = vector.load %arg13[%c0_2, %c0_3] : memref<256x128xf32, #tpu.memory_space<vmem>>, vector<256x128xf32>
    %c0_4 = arith.constant 0 : index
    %c0_5 = arith.constant 0 : index
    %6 = vector.load %arg3[%c0_4, %c0_5] : memref<256x128xbf16, #tpu.memory_space<vmem>>, vector<256x128xbf16>
    %cst = arith.constant dense<0.000000e+00> : vector<256x128xf32>
    %7 = tpu.matmul %4, %6, %cst {dimension_numbers = #tpu.dot_dimension_numbers<[1], [0], [0], [1], [0, 0, 1, 1], [], []>} : vector<256x256xbf16>, vector<256x128xbf16>, vector<256x128xf32> -> vector<256x128xf32>
    %8 = arith.addf %5, %7 : vector<256x128xf32>
    %c0_6 = arith.constant 0 : index
    %c0_7 = arith.constant 0 : index
    %9 = vector.load %arg13[%c0_6, %c0_7] : memref<256x128xf32, #tpu.memory_space<vmem>>, vector<256x128xf32>
    tpu.vector_store %arg13[%c0_6, %c0_7], %8 {strides = array<i32>} : memref<256x128xf32, #tpu.memory_space<vmem>>, vector<256x128xf32>,
    %c2_i32 = arith.constant 2 : i32
    %10 = arith.cmpi eq, %arg1, %c2_i32 : i32
    %11 = arith.extui %10 : i1 to i32
    %c0_i32_8 = arith.constant 0 : i32
    %12 = arith.cmpi ne, %11, %c0_i32_8 : i32
    scf.if %12 {
      %c0_9 = arith.constant 0 : index
      %c0_10 = arith.constant 0 : index
      %13 = vector.load %arg13[%c0_9, %c0_10] : memref<256x128xf32, #tpu.memory_space<vmem>>, vector<256x128xf32>
      %c0_11 = arith.constant 0 : index
      %c0_12 = arith.constant 0 : index
      %14 = vector.load %arg5[%c0_11, %c0_12] : memref<256x1xf32, #tpu.memory_space<vmem>>, vector<256x1xf32>
      %15 = vector.broadcast %14 : vector<256x1xf32> to vector<256x128xf32>
      %16 = arith.mulf %13, %15 : vector<256x128xf32>
      %17 = arith.truncf %16 : vector<256x128xf32> to vector<256x128xbf16>
      %c0_13 = arith.constant 0 : index
      %c0_14 = arith.constant 0 : index
      %18 = vector.load %arg6[%c0_13, %c0_14] : memref<128x128xbf16, #tpu.memory_space<vmem>>, vector<128x128xbf16>
      %cst_15 = arith.constant dense<0.000000e+00> : vector<256x128xf32>
      %19 = tpu.matmul %17, %18, %cst_15 {dimension_numbers = #tpu.dot_dimension_numbers<[1], [0], [0], [1], [0, 0, 1, 1], [], []>} : vector<256x128xbf16>, vector<128x128xbf16>, vector<256x128xf32> -> vector<256x128xf32>
      %c0_16 = arith.constant 0 : index
      %c0_17 = arith.constant 0 : index
      %20 = vector.load %arg4[%c0_16, %c0_17] : memref<256x128xbf16, #tpu.memory_space<vmem>>, vector<256x128xbf16>
      %c0_18 = arith.constant 0 : index
      %c0_19 = arith.constant 0 : index
      %21 = vector.load %arg7[%c0_18, %c0_19] : memref<128x128xbf16, #tpu.memory_space<vmem>>, vector<128x128xbf16>
      %cst_20 = arith.constant dense<0.000000e+00> : vector<256x128xf32>
      %22 = tpu.matmul %20, %21, %cst_20 {dimension_numbers = #tpu.dot_dimension_numbers<[1], [0], [0], [1], [0, 0, 1, 1], [], []>} : vector<256x128xbf16>, vector<128x128xbf16>, vector<256x128xf32> -> vector<256x128xf32>
      %23 = arith.addf %19, %22 : vector<256x128xf32>
      %c0_21 = arith.constant 0 : index
      %c0_22 = arith.constant 0 : index
      %24 = vector.load %arg8[%c0_21, %c0_22] : memref<1x128xf32, #tpu.memory_space<vmem>>, vector<1x128xf32>
      %25 = vector.broadcast %24 : vector<1x128xf32> to vector<256x128xf32>
      %26 = arith.addf %23, %25 : vector<256x128xf32>
      %cst_23 = arith.constant 0.000000e+00 : f32
      %27 = vector.broadcast %cst_23 : f32 to vector<256x128xf32>
      %28 = arith.maximumf %26, %27 : vector<256x128xf32>
      %29 = arith.truncf %28 : vector<256x128xf32> to vector<256x128xbf16>
      %c0_24 = arith.constant 0 : index
      %c0_25 = arith.constant 0 : index
      %30 = vector.load %arg9[%c0_24, %c0_25] : memref<128x128xbf16, #tpu.memory_space<vmem>>, vector<128x128xbf16>
      %cst_26 = arith.constant dense<0.000000e+00> : vector<256x128xf32>
      %31 = tpu.matmul %29, %30, %cst_26 {dimension_numbers = #tpu.dot_dimension_numbers<[1], [0], [0], [1], [0, 0, 1, 1], [], []>} : vector<256x128xbf16>, vector<128x128xbf16>, vector<256x128xf32> -> vector<256x128xf32>
      %32 = arith.truncf %31 : vector<256x128xf32> to vector<256x128xbf16>
      %c0_27 = arith.constant 0 : index
      %c0_28 = arith.constant 0 : index
      %33 = vector.load %arg11[%c0_27, %c0_28] : memref<256x128xbf16, #tpu.memory_space<vmem>>, vector<256x128xbf16>
      tpu.vector_store %arg11[%c0_27, %c0_28], %32 {strides = array<i32>} : memref<256x128xbf16, #tpu.memory_space<vmem>>, vector<256x128xbf16>,
      %c0_29 = arith.constant 0 : index
      %c0_30 = arith.constant 0 : index
      %34 = vector.load %arg10[%c0_29, %c0_30] : memref<128x128xbf16, #tpu.memory_space<vmem>>, vector<128x128xbf16>
      %cst_31 = arith.constant dense<0.000000e+00> : vector<256x128xf32>
      %35 = tpu.matmul %29, %34, %cst_31 {dimension_numbers = #tpu.dot_dimension_numbers<[1], [0], [0], [1], [0, 0, 1, 1], [], []>} : vector<256x128xbf16>, vector<128x128xbf16>, vector<256x128xf32> -> vector<256x128xf32>
      %36 = arith.truncf %35 : vector<256x128xf32> to vector<256x128xbf16>
      %c0_32 = arith.constant 0 : index
      %c0_33 = arith.constant 0 : index
      %37 = vector.load %arg12[%c0_32, %c0_33] : memref<256x128xbf16, #tpu.memory_space<vmem>>, vector<256x128xbf16>
      tpu.vector_store %arg12[%c0_32, %c0_33], %36 {strides = array<i32>} : memref<256x128xbf16, #tpu.memory_space<vmem>>, vector<256x128xbf16>,
    } else {
    }
    return
  }
  func.func @transform_0(%arg0: i32, %arg1: i32) -> (i32, i32) {
    %c0_i32 = arith.constant 0 : i32
    return %arg0, %arg1 : i32, i32
  }
  func.func @transform_1(%arg0: i32, %arg1: i32) -> (i32, i32) {
    %c0_i32 = arith.constant 0 : i32
    %c0_i32_0 = arith.constant 0 : i32
    return %arg1, %c0_i32 : i32, i32
  }
  func.func @transform_2(%arg0: i32, %arg1: i32) -> (i32, i32) {
    %c0_i32 = arith.constant 0 : i32
    %c0_i32_0 = arith.constant 0 : i32
    return %arg0, %c0_i32 : i32, i32
  }
  func.func @transform_3(%arg0: i32, %arg1: i32) -> (i32, i32) {
    %c0_i32 = arith.constant 0 : i32
    %c0_i32_0 = arith.constant 0 : i32
    return %arg0, %c0_i32 : i32, i32
  }
  func.func @transform_4(%arg0: i32, %arg1: i32) -> (i32, i32) {
    %c0_i32 = arith.constant 0 : i32
    %c0_i32_0 = arith.constant 0 : i32
    %c0_i32_1 = arith.constant 0 : i32
    return %c0_i32, %c0_i32_0 : i32, i32
  }
  func.func @transform_5(%arg0: i32, %arg1: i32) -> (i32, i32) {
    %c0_i32 = arith.constant 0 : i32
    %c0_i32_0 = arith.constant 0 : i32
    %c0_i32_1 = arith.constant 0 : i32
    return %c0_i32, %c0_i32_0 : i32, i32
  }
  func.func @transform_6(%arg0: i32, %arg1: i32) -> (i32, i32) {
    %c0_i32 = arith.constant 0 : i32
    %c0_i32_0 = arith.constant 0 : i32
    %c0_i32_1 = arith.constant 0 : i32
    return %c0_i32, %c0_i32_0 : i32, i32
  }
  func.func @transform_7(%arg0: i32, %arg1: i32) -> (i32, i32) {
    %c0_i32 = arith.constant 0 : i32
    %c0_i32_0 = arith.constant 0 : i32
    %c0_i32_1 = arith.constant 0 : i32
    return %c0_i32, %c0_i32_0 : i32, i32
  }
  func.func @transform_8(%arg0: i32, %arg1: i32) -> (i32, i32) {
    %c0_i32 = arith.constant 0 : i32
    %c0_i32_0 = arith.constant 0 : i32
    %c0_i32_1 = arith.constant 0 : i32
    return %c0_i32, %c0_i32_0 : i32, i32
  }
  func.func @transform_9(%arg0: i32, %arg1: i32) -> (i32, i32) {
    %c0_i32 = arith.constant 0 : i32
    %c0_i32_0 = arith.constant 0 : i32
    return %arg0, %c0_i32 : i32, i32
  }
  func.func @transform_10(%arg0: i32, %arg1: i32) -> (i32, i32) {
    %c0_i32 = arith.constant 0 : i32
    %c0_i32_0 = arith.constant 0 : i32
    return %arg0, %c0_i32 : i32, i32
  }
}

</mosaic_0001>

<llo_original>
// kernel: tpu_custom_call.1
$region0: #{tpu_custom_call.1}
  #allocation0 [shape = 'u32[]', space=smem, size = 0x4, offset = 0x4, fixed_abs, tag = 'smem constant byte address 0x4 - core index']
  #allocation1 [shape = 'u32[144,128]{1,0:T(1,128)}', space=vmem, size = 0x12000, scoped, tag = 'internal scratch']
  #allocation2 [shape = 'f32[256,128]{1,0:T(8,128)}', space=vmem, size = 0x20000, scoped, tag = 'scratch operand']
  %s0 = inlined_call_operand.hbm [shape: s8[768,768], index: 0, kind: input, shape index: {}]
  %s1 = inlined_call_operand.vmem [shape: bf16[768,128], index: 1, kind: input, shape index: {}]
  %s2 = inlined_call_operand.vmem [shape: bf16[768,128], index: 2, kind: input, shape index: {}]
  %s3 = inlined_call_operand.vmem [shape: f32[768,1], index: 3, kind: input, shape index: {}]
  %s4 = inlined_call_operand.hbm [shape: bf16[128,128], index: 4, kind: input, shape index: {}]
  %s5 = inlined_call_operand.hbm [shape: bf16[128,128], index: 5, kind: input, shape index: {}]
  %s6 = inlined_call_operand.vmem [shape: f32[1,128], index: 6, kind: input, shape index: {}]
  %s7 = inlined_call_operand.hbm [shape: bf16[128,128], index: 7, kind: input, shape index: {}]
  %s8 = inlined_call_operand.hbm [shape: bf16[128,128], index: 8, kind: input, shape index: {}]
  %s9 = inlined_call_operand.hbm [shape: bf16[768,128], index: 9, kind: output, shape index: {0}]
  %s10 = inlined_call_operand.hbm [shape: bf16[768,128], index: 10, kind: output, shape index: {1}]
  %11 = xla_tuple %s9, %s10
  %s12 = sld [smem:[#allocation0]]
  $region105: #{tpu_custom_call.1} parent=0
    _
  %s14 = ssub.s32 1, %s12
  %s15 = scalar_select 0, %s14, %s12
  $region1: #{tpu_custom_call.1} parent=0
    #allocation3 [shape = 'u8[131072]{0}', space=vmem, size = 0x20000, scoped, tag = 'input window, operand 0']
    #allocation4 [shape = 's32[2]{0}', space=sflag, size = 0x8, scoped, tag = 'scoped memory for tpu_custom_call.1']
    #allocation5 [shape = 's32[2]{0}', space=sflag, size = 0x8, scoped, tag = 'scoped memory for tpu_custom_call.1']
    #allocation6 [shape = 'u8[32768]{0}', space=vmem, size = 0x8000, scoped, tag = 'input window, operand 4, single buffered']
    #allocation7 [shape = 's32[1]{0}', space=sflag, size = 0x4, scoped, tag = 'scoped memory for tpu_custom_call.1']
    #allocation8 [shape = 'u8[32768]{0}', space=vmem, size = 0x8000, scoped, tag = 'input window, operand 5, single buffered']
    #allocation9 [shape = 'u8[32768]{0}', space=vmem, size = 0x8000, scoped, tag = 'input window, operand 7, single buffered']
    #allocation10 [shape = 's32[1]{0}', space=sflag, size = 0x4, scoped, tag = 'scoped memory for tpu_custom_call.1']
    #allocation11 [shape = 'u8[32768]{0}', space=vmem, size = 0x8000, scoped, tag = 'input window, operand 8, single buffered']
    #allocation12 [shape = 'u8[131072]{0}', space=vmem, size = 0x20000, scoped, tag = 'output window, operand 0']
    #allocation13 [shape = 'u8[131072]{0}', space=vmem, size = 0x20000, scoped, tag = 'output window, operand 1']
    #allocation14 [shape = 's32[2]{0}', space=sflag, size = 0x8, scoped, tag = 'scoped memory for tpu_custom_call.1']
    %16 = vsyncpa [#allocation4], 0
    %s17 = scalar_lea.sflag [#allocation4], 1
    %18 = vsyncpa %s17, 0
    %19 = vsyncpa [#allocation7], 0
    %20 = vsyncpa [#allocation10], 0
    %21 = vsyncpa [#allocation5], 0
    %s22 = scalar_lea.sflag [#allocation5], 1
    %23 = vsyncpa %s22, 0
    %24 = vsyncpa [#allocation14], 0
    %s25 = scalar_lea.sflag [#allocation14], 1
    %26 = vsyncpa %s25, 0
    loop: start=0, step=1, limit=11
    $region2: #{tpu_custom_call.1} parent=1 // loop_pre_header
      _
    $region3: #{tpu_custom_call.1} parent=1 // loop_header
      %s28 = sphi 0, %s32
      %p29 = scmp.ge.s32.totalorder %s28, 11
      %s35 = sphi 0, %s47
      %s36 = sphi 0, %s43
      %s37 = sphi 0, %s35
      %s38 = sphi 0, %s36
      %s39 = sphi 0, %s37
      %s40 = sphi 0, %s38
      %s52 = sphi 0, %s54
      %s55 = sphi 0, %s52
      %s56 = sphi 0, %s55
      %s72 = sphi 0, %s56
      %s78 = sphi 0, %s80
      %s81 = sphi 0, %s78
      %s82 = sphi 0, %s81
      %s98 = sphi 0, %s82
      %s104 = sphi 0, %s106
      %s107 = sphi 0, %s104
      %s108 = sphi 0, %s107
      %s124 = sphi 0, %s108
      %s130 = sphi 0, %s132
      %s133 = sphi 0, %s130
      %s134 = sphi 0, %s133
      %s150 = sphi 0, %s134
      %s154 = sphi 0, %s154
      %s156 = sphi 0, %s154
      %s157 = sphi 0, %s156
      %s171 = sphi 0, %s157
      %s175 = sphi 0, %s175
      %s177 = sphi 0, %s175
      %s178 = sphi 0, %s177
      %s192 = sphi 0, %s178
      %s196 = sphi 0, %s196
      %s198 = sphi 0, %s196
      %s199 = sphi 0, %s198
      %s213 = sphi 0, %s199
      %s217 = sphi 0, %s217
      %s219 = sphi 0, %s217
      %s220 = sphi 0, %s219
      %s234 = sphi 0, %s220
      %s238 = sphi 0, %s238
      %s240 = sphi 0, %s238
      %s241 = sphi 0, %s240
      %s255 = sphi 0, %s241
      %s261 = sphi 0, %s263
      %s264 = sphi 0, %s261
      %s265 = sphi 0, %s264
      %s281 = sphi 0, %s265
      %s287 = sphi 0, %s289
      %s290 = sphi 0, %s287
      %s291 = sphi 0, %s290
      %s307 = sphi 0, %s291
    $region4: #{tpu_custom_call.1} parent=1 // loop_header_branch
      %31 = sbr.rel (%p29) target = $region8
    $region5: #{tpu_custom_call.1} parent=1 // loop_body
      %s33 = ssub.s32 %s28, 1
      %s34 = ssub.s32 %s28, 2
      %s41 = sadd.s32 1, %s36
      %p42 = scmp.ge.s32.totalorder %s41, 3
      %s43 = scalar_select %p42, 0, %s41
      %s44 = sadd.s32 1, %s35
      %s45 = scalar_select %p42, %s44, %s35
      %p46 = scmp.ge.s32.totalorder %s45, 3
      %s47 = scalar_select %p46, 0, %s45
      %s48 = ssub.s32 %s35, %s47
      %s49 = ssub.s32 %s36, %s43
      %s50 = sor.u32 %s48, %s49
      %p51 = scmp.eq.s32.totalorder %s50, 0
      %s53 = sadd.s32 %s52, 1
      %s54 = scalar_select %p51, %s52, %s53
      %p57 = pneg %p51
      %p58 = scmp.eq.s32.totalorder %s28, 8
      %p59 = por %p57, %p58
      %p60 = scmp.ne.s32.totalorder %s52, %s55
      %p61 = scmp.eq.s32.totalorder %s28, 0
      %p62 = por %p60, %p61
      %p63 = scmp.ne.s32.totalorder %s52, %s55
      %p64 = scmp.eq.s32.totalorder %s33, 8
      %p65 = por %p63, %p64
      %p66 = scmp.ne.s32.totalorder %s55, %s56
      %p67 = scmp.eq.s32.totalorder %s33, 0
      %p68 = por %p66, %p67
      %p69 = scmp.ne.s32.totalorder %s55, %s56
      %p70 = scmp.eq.s32.totalorder %s34, 8
      %p71 = por %p69, %p70
      %p73 = scmp.ne.s32.totalorder %s56, %s72
      %p74 = scmp.eq.s32.totalorder %s34, 0
      %p75 = por %p73, %p74
      %s76 = ssub.s32 %s36, %s43
      %p77 = scmp.eq.s32.totalorder %s76, 0
      %s79 = sadd.s32 %s78, 1
      %s80 = scalar_select %p77, %s78, %s79
      %p83 = pneg %p77
      %p84 = scmp.eq.s32.totalorder %s28, 8
      %p85 = por %p83, %p84
      %p86 = scmp.ne.s32.totalorder %s78, %s81
      %p87 = scmp.eq.s32.totalorder %s28, 0
      %p88 = por %p86, %p87
      %p89 = scmp.ne.s32.totalorder %s78, %s81
      %p90 = scmp.eq.s32.totalorder %s33, 8
      %p91 = por %p89, %p90
      %p92 = scmp.ne.s32.totalorder %s81, %s82
      %p93 = scmp.eq.s32.totalorder %s33, 0
      %p94 = por %p92, %p93
      %p95 = scmp.ne.s32.totalorder %s81, %s82
      %p96 = scmp.eq.s32.totalorder %s34, 8
      %p97 = por %p95, %p96
      %p99 = scmp.ne.s32.totalorder %s82, %s98
      %p100 = scmp.eq.s32.totalorder %s34, 0
      %p101 = por %p99, %p100
      %s102 = ssub.s32 %s35, %s47
      %p103 = scmp.eq.s32.totalorder %s102, 0
      %s105 = sadd.s32 %s104, 1
      %s106 = scalar_select %p103, %s104, %s105
      %p109 = pneg %p103
      %p110 = scmp.eq.s32.totalorder %s28, 8
      %p111 = por %p109, %p110
      %p112 = scmp.ne.s32.totalorder %s104, %s107
      %p113 = scmp.eq.s32.totalorder %s28, 0
      %p114 = por %p112, %p113
      %p115 = scmp.ne.s32.totalorder %s104, %s107
      %p116 = scmp.eq.s32.totalorder %s33, 8
      %p117 = por %p115, %p116
      %p118 = scmp.ne.s32.totalorder %s107, %s108
      %p119 = scmp.eq.s32.totalorder %s33, 0
      %p120 = por %p118, %p119
      %p121 = scmp.ne.s32.totalorder %s107, %s108
      %p122 = scmp.eq.s32.totalorder %s34, 8
      %p123 = por %p121, %p122
      %p125 = scmp.ne.s32.totalorder %s108, %s124
      %p126 = scmp.eq.s32.totalorder %s34, 0
      %p127 = por %p125, %p126
      %s128 = ssub.s32 %s35, %s47
      %p129 = scmp.eq.s32.totalorder %s128, 0
      %s131 = sadd.s32 %s130, 1
      %s132 = scalar_select %p129, %s130, %s131
      %p135 = pneg %p129
      %p136 = scmp.eq.s32.totalorder %s28, 8
      %p137 = por %p135, %p136
      %p138 = scmp.ne.s32.totalorder %s130, %s133
      %p139 = scmp.eq.s32.totalorder %s28, 0
      %p140 = por %p138, %p139
      %p141 = scmp.ne.s32.totalorder %s130, %s133
      %p142 = scmp.eq.s32.totalorder %s33, 8
      %p143 = por %p141, %p142
      %p144 = scmp.ne.s32.totalorder %s133, %s134
      %p145 = scmp.eq.s32.totalorder %s33, 0
      %p146 = por %p144, %p145
      %p147 = scmp.ne.s32.totalorder %s133, %s134
      %p148 = scmp.eq.s32.totalorder %s34, 8
      %p149 = por %p147, %p148
      %p151 = scmp.ne.s32.totalorder %s134, %s150
      %p152 = scmp.eq.s32.totalorder %s34, 0
      %p153 = por %p151, %p152
      %s155 = sadd.s32 %s154, 1
      %p158 = scmp.eq.s32.totalorder %s28, 8
      %p159 = scmp.ne.s32.totalorder %s154, %s156
      %p160 = scmp.eq.s32.totalorder %s28, 0
      %p161 = por %p159, %p160
      %p162 = scmp.ne.s32.totalorder %s154, %s156
      %p163 = scmp.eq.s32.totalorder %s33, 8
      %p164 = por %p162, %p163
      %p165 = scmp.ne.s32.totalorder %s156, %s157
      %p166 = scmp.eq.s32.totalorder %s33, 0
      %p167 = por %p165, %p166
      %p168 = scmp.ne.s32.totalorder %s156, %s157
      %p169 = scmp.eq.s32.totalorder %s34, 8
      %p170 = por %p168, %p169
      %p172 = scmp.ne.s32.totalorder %s157, %s171
      %p173 = scmp.eq.s32.totalorder %s34, 0
      %p174 = por %p172, %p173
      %s176 = sadd.s32 %s175, 1
      %p179 = scmp.eq.s32.totalorder %s28, 8
      %p180 = scmp.ne.s32.totalorder %s175, %s177
      %p181 = scmp.eq.s32.totalorder %s28, 0
      %p182 = por %p180, %p181
      %p183 = scmp.ne.s32.totalorder %s175, %s177
      %p184 = scmp.eq.s32.totalorder %s33, 8
      %p185 = por %p183, %p184
      %p186 = scmp.ne.s32.totalorder %s177, %s178
      %p187 = scmp.eq.s32.totalorder %s33, 0
      %p188 = por %p186, %p187
      %p189 = scmp.ne.s32.totalorder %s177, %s178
      %p190 = scmp.eq.s32.totalorder %s34, 8
      %p191 = por %p189, %p190
      %p193 = scmp.ne.s32.totalorder %s178, %s192
      %p194 = scmp.eq.s32.totalorder %s34, 0
      %p195 = por %p193, %p194
      %s197 = sadd.s32 %s196, 1
      %p200 = scmp.eq.s32.totalorder %s28, 8
      %p201 = scmp.ne.s32.totalorder %s196, %s198
      %p202 = scmp.eq.s32.totalorder %s28, 0
      %p203 = por %p201, %p202
      %p204 = scmp.ne.s32.totalorder %s196, %s198
      %p205 = scmp.eq.s32.totalorder %s33, 8
      %p206 = por %p204, %p205
      %p207 = scmp.ne.s32.totalorder %s198, %s199
      %p208 = scmp.eq.s32.totalorder %s33, 0
      %p209 = por %p207, %p208
      %p210 = scmp.ne.s32.totalorder %s198, %s199
      %p211 = scmp.eq.s32.totalorder %s34, 8
      %p212 = por %p210, %p211
      %p214 = scmp.ne.s32.totalorder %s199, %s213
      %p215 = scmp.eq.s32.totalorder %s34, 0
      %p216 = por %p214, %p215
      %s218 = sadd.s32 %s217, 1
      %p221 = scmp.eq.s32.totalorder %s28, 8
      %p222 = scmp.ne.s32.totalorder %s217, %s219
      %p223 = scmp.eq.s32.totalorder %s28, 0
      %p224 = por %p222, %p223
      %p225 = scmp.ne.s32.totalorder %s217, %s219
      %p226 = scmp.eq.s32.totalorder %s33, 8
      %p227 = por %p225, %p226
      %p228 = scmp.ne.s32.totalorder %s219, %s220
      %p229 = scmp.eq.s32.totalorder %s33, 0
      %p230 = por %p228, %p229
      %p231 = scmp.ne.s32.totalorder %s219, %s220
      %p232 = scmp.eq.s32.totalorder %s34, 8
      %p233 = por %p231, %p232
      %p235 = scmp.ne.s32.totalorder %s220, %s234
      %p236 = scmp.eq.s32.totalorder %s34, 0
      %p237 = por %p235, %p236
      %s239 = sadd.s32 %s238, 1
      %p242 = scmp.eq.s32.totalorder %s28, 8
      %p243 = scmp.ne.s32.totalorder %s238, %s240
      %p244 = scmp.eq.s32.totalorder %s28, 0
      %p245 = por %p243, %p244
      %p246 = scmp.ne.s32.totalorder %s238, %s240
      %p247 = scmp.eq.s32.totalorder %s33, 8
      %p248 = por %p246, %p247
      %p249 = scmp.ne.s32.totalorder %s240, %s241
      %p250 = scmp.eq.s32.totalorder %s33, 0
      %p251 = por %p249, %p250
      %p252 = scmp.ne.s32.totalorder %s240, %s241
      %p253 = scmp.eq.s32.totalorder %s34, 8
      %p254 = por %p252, %p253
      %p256 = scmp.ne.s32.totalorder %s241, %s255
      %p257 = scmp.eq.s32.totalorder %s34, 0
      %p258 = por %p256, %p257
      %s259 = ssub.s32 %s35, %s47
      %p260 = scmp.eq.s32.totalorder %s259, 0
      %s262 = sadd.s32 %s261, 1
      %s263 = scalar_select %p260, %s261, %s262
      %p266 = pneg %p260
      %p267 = scmp.eq.s32.totalorder %s28, 8
      %p268 = por %p266, %p267
      %p269 = scmp.ne.s32.totalorder %s261, %s264
      %p270 = scmp.eq.s32.totalorder %s28, 0
      %p271 = por %p269, %p270
      %p272 = scmp.ne.s32.totalorder %s261, %s264
      %p273 = scmp.eq.s32.totalorder %s33, 8
      %p274 = por %p272, %p273
      %p275 = scmp.ne.s32.totalorder %s264, %s265
      %p276 = scmp.eq.s32.totalorder %s33, 0
      %p277 = por %p275, %p276
      %p278 = scmp.ne.s32.totalorder %s264, %s265
      %p279 = scmp.eq.s32.totalorder %s34, 8
      %p280 = por %p278, %p279
      %p282 = scmp.ne.s32.totalorder %s265, %s281
      %p283 = scmp.eq.s32.totalorder %s34, 0
      %p284 = por %p282, %p283
      %s285 = ssub.s32 %s35, %s47
      %p286 = scmp.eq.s32.totalorder %s285, 0
      %s288 = sadd.s32 %s287, 1
      %s289 = scalar_select %p286, %s287, %s288
      %p292 = pneg %p286
      %p293 = scmp.eq.s32.totalorder %s28, 8
      %p294 = por %p292, %p293
      %p295 = scmp.ne.s32.totalorder %s287, %s290
      %p296 = scmp.eq.s32.totalorder %s28, 0
      %p297 = por %p295, %p296
      %p298 = scmp.ne.s32.totalorder %s287, %s290
      %p299 = scmp.eq.s32.totalorder %s33, 8
      %p300 = por %p298, %p299
      %p301 = scmp.ne.s32.totalorder %s290, %s291
      %p302 = scmp.eq.s32.totalorder %s33, 0
      %p303 = por %p301, %p302
      %p304 = scmp.ne.s32.totalorder %s290, %s291
      %p305 = scmp.eq.s32.totalorder %s34, 8
      %p306 = por %p304, %p305
      %p308 = scmp.ne.s32.totalorder %s291, %s307
      %p309 = scmp.eq.s32.totalorder %s34, 0
      %p310 = por %p308, %p309
      %p311 = scmp.le.s32.totalorder 1, %s28
      %p312 = scmp.lt.s32.totalorder %s28, 10
      %p313 = pnand %p311, %p312
      %p314 = pneg %p313
      // Predicated region
      $region9: #{tpu_custom_call.1} parent=5 // pred_check
        _
      $region10: #{tpu_custom_call.1} parent=5 // pred_check_branch
        %316 = sbr.rel (%p313) target = $region12
      $region11: #{tpu_custom_call.1} parent=5 // pred_region
        %s317 = ssub.s32 %s28, 1
        // Predicated region
        $region13: #{tpu_custom_call.1} parent=11 // pred_check
          %p318 = pneg %p167
        $region14: #{tpu_custom_call.1} parent=11 // pred_check_branch
          %320 = sbr.rel (%p318) target = $region16
        $region15: #{tpu_custom_call.1} parent=11 // pred_region
          %s322 = ssub.s32 1024, 1024
          %323 = vsyncadd [#allocation7], %s322
          %s324 = sshll.u32 [#allocation6], 4
          %s325 = int_to_ptr.vmem [resolvable:$true] %s324
          %330 = dma.hbm_to_vmem [thread:$0]  %s4, 1024, %s325, [#allocation7], 64, 64, 4
        $region16: #{tpu_custom_call.1} parent=11 // pred_fallthru
          _
        // Predicated region
        $region17: #{tpu_custom_call.1} parent=11 // pred_check
          %p331 = pneg %p188
        $region18: #{tpu_custom_call.1} parent=11 // pred_check_branch
          %333 = sbr.rel (%p331) target = $region20
        $region19: #{tpu_custom_call.1} parent=11 // pred_region
          %s335 = ssub.s32 1024, 1024
          %336 = vsyncadd [#allocation7], %s335
          %s337 = sshll.u32 [#allocation8], 4
          %s338 = int_to_ptr.vmem [resolvable:$true] %s337
          %343 = dma.hbm_to_vmem [thread:$0]  %s5, 1024, %s338, [#allocation7], 64, 64, 4
        $region20: #{tpu_custom_call.1} parent=11 // pred_fallthru
          _
        // Predicated region
        $region21: #{tpu_custom_call.1} parent=11 // pred_check
          %p344 = pneg %p209
        $region22: #{tpu_custom_call.1} parent=11 // pred_check_branch
          %346 = sbr.rel (%p344) target = $region24
        $region23: #{tpu_custom_call.1} parent=11 // pred_region
          _
        $region24: #{tpu_custom_call.1} parent=11 // pred_fallthru
          _
        // Predicated region
        $region25: #{tpu_custom_call.1} parent=11 // pred_check
          %p347 = pneg %p230
        $region26: #{tpu_custom_call.1} parent=11 // pred_check_branch
          %349 = sbr.rel (%p347) target = $region28
        $region27: #{tpu_custom_call.1} parent=11 // pred_region
          %s351 = ssub.s32 1024, 1024
          %352 = vsyncadd [#allocation10], %s351
          %s353 = sshll.u32 [#allocation9], 4
          %s354 = int_to_ptr.vmem [resolvable:$true] %s353
          %359 = dma.hbm_to_vmem [thread:$0]  %s7, 1024, %s354, [#allocation10], 64, 64, 4
        $region28: #{tpu_custom_call.1} parent=11 // pred_fallthru
          _
        // Predicated region
        $region29: #{tpu_custom_call.1} parent=11 // pred_check
          %p360 = pneg %p251
        $region30: #{tpu_custom_call.1} parent=11 // pred_check_branch
          %362 = sbr.rel (%p360) target = $region32
        $region31: #{tpu_custom_call.1} parent=11 // pred_region
          %s364 = ssub.s32 1024, 1024
          %365 = vsyncadd [#allocation10], %s364
          %s366 = sshll.u32 [#allocation11], 4
          %s367 = int_to_ptr.vmem [resolvable:$true] %s366
          %372 = dma.hbm_to_vmem [thread:$0]  %s8, 1024, %s367, [#allocation10], 64, 64, 4
        $region32: #{tpu_custom_call.1} parent=11 // pred_fallthru
          _
      $region12: #{tpu_custom_call.1} parent=5 // pred_fallthru
        _
      %p373 = scmp.lt.s32.totalorder %s28, 9
      // Predicated region
      $region33: #{tpu_custom_call.1} parent=5 // pred_check
        %p374 = pneg %p373
      $region34: #{tpu_custom_call.1} parent=5 // pred_check_branch
        %376 = sbr.rel (%p374) target = $region36
      $region35: #{tpu_custom_call.1} parent=5 // pred_region
        // Predicated region
        $region37: #{tpu_custom_call.1} parent=35 // pred_check
          %p377 = pneg %p62
        $region38: #{tpu_custom_call.1} parent=35 // pred_check_branch
          %379 = sbr.rel (%p377) target = $region40
        $region39: #{tpu_custom_call.1} parent=35 // pred_region
          %s380 = sand.u32 %s52, 1
          %s381 = scalar_lea.sflag [#allocation4], %s380
          %s382 = sand.u32 %s52, 1
          %s383 = smul.addr %s382, 128
          %s384 = scalar_lea.vmem [#allocation3], %s383
          %s385 = smul.u32 8, %s35
          %s386 = smul.u32 2, %s36
          %s388 = ssub.s32 2048, 2048
          %389 = vsyncadd %s381, %s388
          %s390 = smul.addr %s385, 6
          %s391 = sadd.s32 %s386, %s390
          %s392 = smul.addr %s391, 128
          %s393 = scalar_lea.hbm %s0, %s392
          %s394 = sshll.u32 %s384, 4
          %s395 = int_to_ptr.vmem [resolvable:$true] %s394
          %400 = dma.hbm_to_vmem [thread:$0]  %s393, 2048, %s395, %s381, 768, 256, 16
        $region40: #{tpu_custom_call.1} parent=35 // pred_fallthru
          _
        // Predicated region
        $region41: #{tpu_custom_call.1} parent=35 // pred_check
          %p401 = pneg %p88
        $region42: #{tpu_custom_call.1} parent=35 // pred_check_branch
          %403 = sbr.rel (%p401) target = $region44
        $region43: #{tpu_custom_call.1} parent=35 // pred_region
          %s404 = smul.u32 32, %s36
          %p405 = scmp.lt.s32.totalorder %s404, 95
          %s406 = scalar_select %p405, %s404, 95
          %s407 = smul.addr %s406, 4
          %s408 = scalar_lea.vmem %s1, %s407
          %s409 = smul.u32 32, %s36
        $region44: #{tpu_custom_call.1} parent=35 // pred_fallthru
          _
        // Predicated region
        $region45: #{tpu_custom_call.1} parent=35 // pred_check
          %p410 = pneg %p114
        $region46: #{tpu_custom_call.1} parent=35 // pred_check_branch
          %412 = sbr.rel (%p410) target = $region48
        $region47: #{tpu_custom_call.1} parent=35 // pred_region
          %s413 = smul.u32 32, %s35
          %p414 = scmp.lt.s32.totalorder %s413, 95
          %s415 = scalar_select %p414, %s413, 95
          %s416 = smul.addr %s415, 4
          %s417 = scalar_lea.vmem %s2, %s416
          %s418 = smul.u32 32, %s35
        $region48: #{tpu_custom_call.1} parent=35 // pred_fallthru
          _
        // Predicated region
        $region49: #{tpu_custom_call.1} parent=35 // pred_check
          %p419 = pneg %p140
        $region50: #{tpu_custom_call.1} parent=35 // pred_check_branch
          %421 = sbr.rel (%p419) target = $region52
        $region51: #{tpu_custom_call.1} parent=35 // pred_region
          %s422 = smul.u32 32, %s35
          %p423 = scmp.lt.s32.totalorder %s422, 95
          %s424 = scalar_select %p423, %s422, 95
          %s425 = smul.addr %s424, 8
          %s426 = scalar_lea.vmem %s3, %s425
          %s427 = smul.u32 32, %s35
        $region52: #{tpu_custom_call.1} parent=35 // pred_fallthru
          _
      $region36: #{tpu_custom_call.1} parent=5 // pred_fallthru
        _
      %p428 = scmp.le.s32.totalorder 1, %s28
      %p429 = scmp.lt.s32.totalorder %s28, 10
      %p430 = pnand %p428, %p429
      %p431 = pneg %p430
      // Predicated region
      $region53: #{tpu_custom_call.1} parent=5 // pred_check
        _
      $region54: #{tpu_custom_call.1} parent=5 // pred_check_branch
        %433 = sbr.rel (%p430) target = $region56
      $region55: #{tpu_custom_call.1} parent=5 // pred_region
        %s434 = ssub.s32 %s28, 1
        %s435 = sand.u32 %s55, 1
        %s436 = scalar_lea.sflag [#allocation4], %s435
        %s437 = sand.u32 %s55, 1
        %s438 = smul.addr %s437, 128
        %s439 = scalar_lea.vmem [#allocation3], %s438
        // Predicated region
        $region57: #{tpu_custom_call.1} parent=55 // pred_check
          %p440 = pneg %p68
        $region58: #{tpu_custom_call.1} parent=55 // pred_check_branch
          %442 = sbr.rel (%p440) target = $region60
        $region59: #{tpu_custom_call.1} parent=55 // pred_region
          %443 = dma.done %s436, 2048
        $region60: #{tpu_custom_call.1} parent=55 // pred_fallthru
          _
        // Predicated region
        $region61: #{tpu_custom_call.1} parent=55 // pred_check
          %p444 = pneg %p167
        $region62: #{tpu_custom_call.1} parent=55 // pred_check_branch
          %446 = sbr.rel (%p444) target = $region64
        $region63: #{tpu_custom_call.1} parent=55 // pred_region
          %447 = dma.done [#allocation7], 1024
        $region64: #{tpu_custom_call.1} parent=55 // pred_fallthru
          _
        // Predicated region
        $region65: #{tpu_custom_call.1} parent=55 // pred_check
          %p448 = pneg %p188
        $region66: #{tpu_custom_call.1} parent=55 // pred_check_branch
          %450 = sbr.rel (%p448) target = $region68
        $region67: #{tpu_custom_call.1} parent=55 // pred_region
          %451 = dma.done [#allocation7], 1024
        $region68: #{tpu_custom_call.1} parent=55 // pred_fallthru
          _
        // Predicated region
        $region69: #{tpu_custom_call.1} parent=55 // pred_check
          %p452 = pneg %p230
        $region70: #{tpu_custom_call.1} parent=55 // pred_check_branch
          %454 = sbr.rel (%p452) target = $region72
        $region71: #{tpu_custom_call.1} parent=55 // pred_region
          %455 = dma.done [#allocation10], 1024
        $region72: #{tpu_custom_call.1} parent=55 // pred_fallthru
          _
        // Predicated region
        $region73: #{tpu_custom_call.1} parent=55 // pred_check
          %p456 = pneg %p251
        $region74: #{tpu_custom_call.1} parent=55 // pred_check_branch
          %458 = sbr.rel (%p456) target = $region76
        $region75: #{tpu_custom_call.1} parent=55 // pred_region
          %459 = dma.done [#allocation10], 1024
        $region76: #{tpu_custom_call.1} parent=55 // pred_fallthru
          _
        %s460 = sand.u32 %s55, 1
        %s461 = scalar_lea.sflag [#allocation4], %s460
        %s462 = sand.u32 %s55, 1
        %s463 = smul.addr %s462, 128
        %s464 = scalar_lea.vmem [#allocation3], %s463
        %p465 = pneg %p68
        %p466 = pneg %p65
        %s467 = smul.u32 32, %s38
        %p468 = scmp.lt.s32.totalorder %s467, 95
        %s469 = scalar_select %p468, %s467, 95
        %s470 = smul.addr %s469, 4
        %s471 = scalar_lea.vmem %s1, %s470
        %p472 = pneg %p94
        %p473 = pneg %p91
        %s474 = smul.u32 32, %s37
        %p475 = scmp.lt.s32.totalorder %s474, 95
        %s476 = scalar_select %p475, %s474, 95
        %s477 = smul.addr %s476, 4
        %s478 = scalar_lea.vmem %s2, %s477
        %p479 = pneg %p120
        %p480 = pneg %p117
        %s481 = smul.u32 32, %s37
        %p482 = scmp.lt.s32.totalorder %s481, 95
        %s483 = scalar_select %p482, %s481, 95
        %s484 = smul.addr %s483, 8
        %s485 = scalar_lea.vmem %s3, %s484
        %p486 = pneg %p146
        %p487 = pneg %p143
        %p488 = pneg %p167
        %p489 = pneg %p164
        %p490 = pneg %p188
        %p491 = pneg %p185
        %p492 = pneg %p209
        %p493 = pneg %p206
        %p494 = pneg %p230
        %p495 = pneg %p227
        %p496 = pneg %p251
        %p497 = pneg %p248
        %p498 = pneg %p277
        %p499 = pneg %p274
        %s500 = sand.u32 %s264, 1
        %s501 = scalar_lea.sflag [#allocation5], %s500
        %s502 = sand.u32 %s264, 1
        %s503 = smul.addr %s502, 128
        %s504 = scalar_lea.vmem [#allocation12], %s503
        %p505 = pneg %p303
        %p506 = pneg %p300
        %s507 = sand.u32 %s290, 1
        %s508 = scalar_lea.sflag [#allocation14], %s507
        %s509 = sand.u32 %s290, 1
        %s510 = smul.addr %s509, 128
        %s511 = scalar_lea.vmem [#allocation13], %s510
        %s512 = smul.u32 8, %s37
        %s513 = smul.u32 2, %s38
        %s514 = smul.u32 32, %s38
        %p515 = scmp.lt.s32.totalorder %s514, 95
        %s516 = scalar_select %p515, %s514, 95
        %s517 = smul.addr %s516, 4
        %s518 = scalar_lea.vmem %s1, %s517
        %s519 = smul.u32 32, %s38
        %s520 = smul.u32 32, %s37
        %p521 = scmp.lt.s32.totalorder %s520, 95
        %s522 = scalar_select %p521, %s520, 95
        %s523 = smul.addr %s522, 4
        %s524 = scalar_lea.vmem %s2, %s523
        %s525 = smul.u32 32, %s37
        %s526 = smul.u32 32, %s37
        %p527 = scmp.lt.s32.totalorder %s526, 95
        %s528 = scalar_select %p527, %s526, 95
        %s529 = smul.addr %s528, 8
        %s530 = scalar_lea.vmem %s3, %s529
        %s531 = smul.u32 32, %s37
        %s532 = smul.u32 32, %s37
        %s533 = smul.u32 32, %s37
        %p535 = scmp.eq.s32.totalorder %s38, 0
        // Predicated region
        $region77: #{tpu_custom_call.1} parent=55 // pred_check
          %p536 = pneg %p535
        $region78: #{tpu_custom_call.1} parent=55 // pred_check_branch
          %538 = sbr.rel (%p536) target = $region80
        $region79: #{tpu_custom_call.1} parent=55 // pred_region
          %539 = vst [vmem:[#allocation2] sm:$0xff] 0.0
          %540 = vst [vmem:[#allocation2 + $0x8] sm:$0xff] 0.0
          %541 = vst [vmem:[#allocation2 + $0x10] sm:$0xff] 0.0
          %542 = vst [vmem:[#allocation2 + $0x18] sm:$0xff] 0.0
          %543 = vst [vmem:[#allocation2 + $0x20] sm:$0xff] 0.0
          %544 = vst [vmem:[#allocation2 + $0x28] sm:$0xff] 0.0
          %545 = vst [vmem:[#allocation2 + $0x30] sm:$0xff] 0.0
          %546 = vst [vmem:[#allocation2 + $0x38] sm:$0xff] 0.0
          %547 = vst [vmem:[#allocation2 + $0x40] sm:$0xff] 0.0
          %548 = vst [vmem:[#allocation2 + $0x48] sm:$0xff] 0.0
          %549 = vst [vmem:[#allocation2 + $0x50] sm:$0xff] 0.0
          %550 = vst [vmem:[#allocation2 + $0x58] sm:$0xff] 0.0
          %551 = vst [vmem:[#allocation2 + $0x60] sm:$0xff] 0.0
          %552 = vst [vmem:[#allocation2 + $0x68] sm:$0xff] 0.0
          %553 = vst [vmem:[#allocation2 + $0x70] sm:$0xff] 0.0
          %554 = vst [vmem:[#allocation2 + $0x78] sm:$0xff] 0.0
          %555 = vst [vmem:[#allocation2 + $0x80] sm:$0xff] 0.0
          %556 = vst [vmem:[#allocation2 + $0x88] sm:$0xff] 0.0
          %557 = vst [vmem:[#allocation2 + $0x90] sm:$0xff] 0.0
          %558 = vst [vmem:[#allocation2 + $0x98] sm:$0xff] 0.0
          %559 = vst [vmem:[#allocation2 + $0xa0] sm:$0xff] 0.0
          %560 = vst [vmem:[#allocation2 + $0xa8] sm:$0xff] 0.0
          %561 = vst [vmem:[#allocation2 + $0xb0] sm:$0xff] 0.0
          %562 = vst [vmem:[#allocation2 + $0xb8] sm:$0xff] 0.0
          %563 = vst [vmem:[#allocation2 + $0xc0] sm:$0xff] 0.0
          %564 = vst [vmem:[#allocation2 + $0xc8] sm:$0xff] 0.0
          %565 = vst [vmem:[#allocation2 + $0xd0] sm:$0xff] 0.0
          %566 = vst [vmem:[#allocation2 + $0xd8] sm:$0xff] 0.0
          %567 = vst [vmem:[#allocation2 + $0xe0] sm:$0xff] 0.0
          %568 = vst [vmem:[#allocation2 + $0xe8] sm:$0xff] 0.0
          %569 = vst [vmem:[#allocation2 + $0xf0] sm:$0xff] 0.0
          %570 = vst [vmem:[#allocation2 + $0xf8] sm:$0xff] 0.0
        $region80: #{tpu_custom_call.1} parent=55 // pred_fallthru
          _
        %v571 = vld [vmem:[%s439] sm:$0xff]
        %v572 = vld [vmem:[%s439 + $0x8] sm:$0xff]
        %v573 = vld [vmem:[%s439 + $0x10] sm:$0xff]
        %v574 = vld [vmem:[%s439 + $0x18] sm:$0xff]
        %v575 = vld [vmem:[%s439 + $0x20] sm:$0xff]
        %v576 = vld [vmem:[%s439 + $0x28] sm:$0xff]
        %v577 = vld [vmem:[%s439 + $0x30] sm:$0xff]
        %v578 = vld [vmem:[%s439 + $0x38] sm:$0xff]
        %v579 = vld [vmem:[%s439 + $0x40] sm:$0xff]
        %v580 = vld [vmem:[%s439 + $0x48] sm:$0xff]
        %v581 = vld [vmem:[%s439 + $0x50] sm:$0xff]
        %v582 = vld [vmem:[%s439 + $0x58] sm:$0xff]
        %v583 = vld [vmem:[%s439 + $0x60] sm:$0xff]
        %v584 = vld [vmem:[%s439 + $0x68] sm:$0xff]
        %v585 = vld [vmem:[%s439 + $0x70] sm:$0xff]
        %v586 = vld [vmem:[%s439 + $0x78] sm:$0xff]
        %v587 = vunpack.c.l.s8.bf16 %v571
        %v588 = vunpack.c.l.s8.bf16 %v572
        %v589 = vunpack.c.h.s8.bf16 %v571
        %v590 = vunpack.c.h.s8.bf16 %v572
        %v591 = vunpack.c.l.s8.bf16 %v573
        %v592 = vunpack.c.l.s8.bf16 %v574
        %v593 = vunpack.c.h.s8.bf16 %v573
        %v594 = vunpack.c.h.s8.bf16 %v574
        %v595 = vunpack.c.l.s8.bf16 %v575
        %v596 = vunpack.c.l.s8.bf16 %v576
        %v597 = vunpack.c.h.s8.bf16 %v575
        %v598 = vunpack.c.h.s8.bf16 %v576
        %v599 = vunpack.c.l.s8.bf16 %v577
        %v600 = vunpack.c.l.s8.bf16 %v578
        %v601 = vunpack.c.h.s8.bf16 %v577
        %v602 = vunpack.c.h.s8.bf16 %v578
        %v603 = vunpack.c.l.s8.bf16 %v579
        %v604 = vunpack.c.l.s8.bf16 %v580
        %v605 = vunpack.c.h.s8.bf16 %v579
        %v606 = vunpack.c.h.s8.bf16 %v580
        %v607 = vunpack.c.l.s8.bf16 %v581
        %v608 = vunpack.c.l.s8.bf16 %v582
        %v609 = vunpack.c.h.s8.bf16 %v581
        %v610 = vunpack.c.h.s8.bf16 %v582
        %v611 = vunpack.c.l.s8.bf16 %v583
        %v612 = vunpack.c.l.s8.bf16 %v584
        %v613 = vunpack.c.h.s8.bf16 %v583
        %v614 = vunpack.c.h.s8.bf16 %v584
        %v615 = vunpack.c.l.s8.bf16 %v585
        %v616 = vunpack.c.l.s8.bf16 %v586
        %v617 = vunpack.c.h.s8.bf16 %v585
        %v618 = vunpack.c.h.s8.bf16 %v586
        %v619 = vld [vmem:[#allocation2] sm:$0xff]
        %v620 = vld [vmem:[#allocation2 + $0x8] sm:$0xff]
        %v621 = vld [vmem:[#allocation2 + $0x10] sm:$0xff]
        %v622 = vld [vmem:[#allocation2 + $0x18] sm:$0xff]
        %v623 = vld [vmem:[#allocation2 + $0x20] sm:$0xff]
        %v624 = vld [vmem:[#allocation2 + $0x28] sm:$0xff]
        %v625 = vld [vmem:[#allocation2 + $0x30] sm:$0xff]
        %v626 = vld [vmem:[#allocation2 + $0x38] sm:$0xff]
        %v627 = vld [vmem:[#allocation2 + $0x40] sm:$0xff]
        %v628 = vld [vmem:[#allocation2 + $0x48] sm:$0xff]
        %v629 = vld [vmem:[#allocation2 + $0x50] sm:$0xff]
        %v630 = vld [vmem:[#allocation2 + $0x58] sm:$0xff]
        %v631 = vld [vmem:[#allocation2 + $0x60] sm:$0xff]
        %v632 = vld [vmem:[#allocation2 + $0x68] sm:$0xff]
        %v633 = vld [vmem:[#allocation2 + $0x70] sm:$0xff]
        %v634 = vld [vmem:[#allocation2 + $0x78] sm:$0xff]
        %v635 = vld [vmem:[#allocation2 + $0x80] sm:$0xff]
        %v636 = vld [vmem:[#allocation2 + $0x88] sm:$0xff]
        %v637 = vld [vmem:[#allocation2 + $0x90] sm:$0xff]
        %v638 = vld [vmem:[#allocation2 + $0x98] sm:$0xff]
        %v639 = vld [vmem:[#allocation2 + $0xa0] sm:$0xff]
        %v640 = vld [vmem:[#allocation2 + $0xa8] sm:$0xff]
        %v641 = vld [vmem:[#allocation2 + $0xb0] sm:$0xff]
        %v642 = vld [vmem:[#allocation2 + $0xb8] sm:$0xff]
        %v643 = vld [vmem:[#allocation2 + $0xc0] sm:$0xff]
        %v644 = vld [vmem:[#allocation2 + $0xc8] sm:$0xff]
        %v645 = vld [vmem:[#allocation2 + $0xd0] sm:$0xff]
        %v646 = vld [vmem:[#allocation2 + $0xd8] sm:$0xff]
        %v647 = vld [vmem:[#allocation2 + $0xe0] sm:$0xff]
        %v648 = vld [vmem:[#allocation2 + $0xe8] sm:$0xff]
        %v649 = vld [vmem:[#allocation2 + $0xf0] sm:$0xff]
        %v650 = vld [vmem:[#allocation2 + $0xf8] sm:$0xff]
        %v651 = vld [vmem:[%s518] sm:$0xf]
        %v652 = vld [vmem:[%s518 + $0x4] sm:$0xf]
        %v653 = vld [vmem:[%s518 + $0x8] sm:$0xf]
        %v654 = vld [vmem:[%s518 + $0xc] sm:$0xf]
        %v655 = vld [vmem:[%s518 + $0x10] sm:$0xf]
        %v656 = vld [vmem:[%s518 + $0x14] sm:$0xf]
        %v657 = vld [vmem:[%s518 + $0x18] sm:$0xf]
        %v658 = vld [vmem:[%s518 + $0x1c] sm:$0xf]
        %v659 = vld [vmem:[%s518 + $0x20] sm:$0xf]
        %v660 = vld [vmem:[%s518 + $0x24] sm:$0xf]
        %v661 = vld [vmem:[%s518 + $0x28] sm:$0xf]
        %v662 = vld [vmem:[%s518 + $0x2c] sm:$0xf]
        %v663 = vld [vmem:[%s518 + $0x30] sm:$0xf]
        %v664 = vld [vmem:[%s518 + $0x34] sm:$0xf]
        %v665 = vld [vmem:[%s518 + $0x38] sm:$0xf]
        %v666 = vld [vmem:[%s518 + $0x3c] sm:$0xf]
        %v667 = vld [vmem:[%s518 + $0x40] sm:$0xf]
        %v668 = vld [vmem:[%s518 + $0x44] sm:$0xf]
        %v669 = vld [vmem:[%s518 + $0x48] sm:$0xf]
        %v670 = vld [vmem:[%s518 + $0x4c] sm:$0xf]
        %v671 = vld [vmem:[%s518 + $0x50] sm:$0xf]
        %v672 = vld [vmem:[%s518 + $0x54] sm:$0xf]
        %v673 = vld [vmem:[%s518 + $0x58] sm:$0xf]
        %v674 = vld [vmem:[%s518 + $0x5c] sm:$0xf]
        %v675 = vld [vmem:[%s518 + $0x60] sm:$0xf]
        %v676 = vld [vmem:[%s518 + $0x64] sm:$0xf]
        %v677 = vld [vmem:[%s518 + $0x68] sm:$0xf]
        %v678 = vld [vmem:[%s518 + $0x6c] sm:$0xf]
        %v679 = vld [vmem:[%s518 + $0x70] sm:$0xf]
        %v680 = vld [vmem:[%s518 + $0x74] sm:$0xf]
        %v681 = vld [vmem:[%s518 + $0x78] sm:$0xf]
        %v682 = vld [vmem:[%s518 + $0x7c] sm:$0xf]
        %v715 = vunpack.c.l.b16 %v651
        %v716 = vunpack.c.l.b16 %v652
        %v717 = vunpack.c.l.b16 %v653
        %v718 = vunpack.c.l.b16 %v654
        %v719 = vunpack.c.l.b16 %v655
        %v720 = vunpack.c.l.b16 %v656
        %v721 = vunpack.c.l.b16 %v657
        %v722 = vunpack.c.l.b16 %v658
        %v723 = vunpack.c.l.b16 %v659
        %v724 = vunpack.c.l.b16 %v660
        %v725 = vunpack.c.l.b16 %v661
        %v726 = vunpack.c.l.b16 %v662
        %v727 = vunpack.c.l.b16 %v663
        %v728 = vunpack.c.l.b16 %v664
        %v729 = vunpack.c.l.b16 %v665
        %v730 = vunpack.c.l.b16 %v666
        %v731 = vunpack.c.l.b16 %v667
        %v732 = vunpack.c.l.b16 %v668
        %v733 = vunpack.c.l.b16 %v669
        %v734 = vunpack.c.l.b16 %v670
        %v735 = vunpack.c.l.b16 %v671
        %v736 = vunpack.c.l.b16 %v672
        %v737 = vunpack.c.l.b16 %v673
        %v738 = vunpack.c.l.b16 %v674
        %v739 = vunpack.c.l.b16 %v675
        %v740 = vunpack.c.l.b16 %v676
        %v741 = vunpack.c.l.b16 %v677
        %v742 = vunpack.c.l.b16 %v678
        %v743 = vunpack.c.l.b16 %v679
        %v744 = vunpack.c.l.b16 %v680
        %v745 = vunpack.c.l.b16 %v681
        %v746 = vunpack.c.l.b16 %v682
        %v747 = vpack.c.b16 %v716, %v715
        %v748 = vpack.c.b16 %v718, %v717
        %v749 = vpack.c.b16 %v720, %v719
        %v750 = vpack.c.b16 %v722, %v721
        %v751 = vpack.c.b16 %v724, %v723
        %v752 = vpack.c.b16 %v726, %v725
        %v753 = vpack.c.b16 %v728, %v727
        %v754 = vpack.c.b16 %v730, %v729
        %v755 = vpack.c.b16 %v732, %v731
        %v756 = vpack.c.b16 %v734, %v733
        %v757 = vpack.c.b16 %v736, %v735
        %v758 = vpack.c.b16 %v738, %v737
        %v759 = vpack.c.b16 %v740, %v739
        %v760 = vpack.c.b16 %v742, %v741
        %v761 = vpack.c.b16 %v744, %v743
        %v762 = vpack.c.b16 %v746, %v745
        %779 = vmatprep.subr.bf16.mxu0 0
        %780 = vmatpush1.bf16.msra.mxu0 %v747
        %781 = vmatprep.subr.bf16.mxu0 0
        %782 = vmatpush1.bf16.msra.mxu0 %v748
        %783 = vmatprep.subr.bf16.mxu0 0
        %784 = vmatpush1.bf16.msra.mxu0 %v749
        %785 = vmatprep.subr.bf16.mxu0 0
        %786 = vmatpush1.bf16.msra.mxu0 %v750
        %787 = vmatprep.subr.bf16.mxu0 0
        %788 = vmatpush1.bf16.msra.mxu0 %v751
        %789 = vmatprep.subr.bf16.mxu0 0
        %790 = vmatpush1.bf16.msra.mxu0 %v752
        %791 = vmatprep.subr.bf16.mxu0 0
        %792 = vmatpush1.bf16.msra.mxu0 %v753
        %793 = vmatprep.subr.bf16.mxu0 0
        %794 = vmatpush1.bf16.msra.mxu0 %v754
        %795 = vmatprep.subr.bf16.mxu0 0
        %796 = vmatpush1.bf16.msra.mxu0 %v755
        %797 = vmatprep.subr.bf16.mxu0 0
        %798 = vmatpush1.bf16.msra.mxu0 %v756
        %799 = vmatprep.subr.bf16.mxu0 0
        %800 = vmatpush1.bf16.msra.mxu0 %v757
        %801 = vmatprep.subr.bf16.mxu0 0
        %802 = vmatpush1.bf16.msra.mxu0 %v758
        %803 = vmatprep.subr.bf16.mxu0 0
        %804 = vmatpush1.bf16.msra.mxu0 %v759
        %805 = vmatprep.subr.bf16.mxu0 0
        %806 = vmatpush1.bf16.msra.mxu0 %v760
        %807 = vmatprep.subr.bf16.mxu0 0
        %808 = vmatpush1.bf16.msra.mxu0 %v761
        %809 = vmatprep.subr.bf16.mxu0 0
        %810 = vmatpush1.bf16.msra.mxu0 %v762
        %811 = vmatprep.mubr.bf16.mxu0 %v588
        %812 = vmatmul.mubr.bf16.gmra.mrb[0].mxu0 %v587
        %v813 = vpop.f32.mrb[0].mxu0
        %v814 = vadd.f32 0.0, %v813
        %v815 = vpop.f32.mrb[0].mxu0
        %v816 = vpop.f32.mrb[0].mxu0
        %v817 = vadd.f32 0.0, %v816
        %v818 = vpop.f32.mrb[0].mxu0
        %819 = vmatprep.mubr.bf16.mxu0 %v590
        %820 = vmatmul.mubr.bf16.gmra.mrb[0].mxu0 %v589
        %v821 = vpop.f32.mrb[0].mxu0
        %v822 = vadd.f32 0.0, %v821
        %v823 = vpop.f32.mrb[0].mxu0
        %v824 = vpop.f32.mrb[0].mxu0
        %v825 = vadd.f32 0.0, %v824
        %v826 = vpop.f32.mrb[0].mxu0
        %827 = vmatprep.mubr.bf16.mxu0 %v592
        %828 = vmatmul.mubr.bf16.gmra.mrb[0].mxu0 %v591
        %v829 = vpop.f32.mrb[0].mxu0
        %v830 = vadd.f32 0.0, %v829
        %v831 = vpop.f32.mrb[0].mxu0
        %v832 = vpop.f32.mrb[0].mxu0
        %v833 = vadd.f32 0.0, %v832
        %v834 = vpop.f32.mrb[0].mxu0
        %835 = vmatprep.mubr.bf16.mxu0 %v594
        %836 = vmatmul.mubr.bf16.gmra.mrb[0].mxu0 %v593
        %v837 = vpop.f32.mrb[0].mxu0
        %v838 = vadd.f32 0.0, %v837
        %v839 = vpop.f32.mrb[0].mxu0
        %v840 = vpop.f32.mrb[0].mxu0
        %v841 = vadd.f32 0.0, %v840
        %v842 = vpop.f32.mrb[0].mxu0
        %843 = vmatprep.mubr.bf16.mxu0 %v596
        %844 = vmatmul.mubr.bf16.gmra.mrb[0].mxu0 %v595
        %v845 = vpop.f32.mrb[0].mxu0
        %v846 = vadd.f32 0.0, %v845
        %v847 = vpop.f32.mrb[0].mxu0
        %v848 = vpop.f32.mrb[0].mxu0
        %v849 = vadd.f32 0.0, %v848
        %v850 = vpop.f32.mrb[0].mxu0
        %851 = vmatprep.mubr.bf16.mxu0 %v598
        %852 = vmatmul.mubr.bf16.gmra.mrb[0].mxu0 %v597
        %v853 = vpop.f32.mrb[0].mxu0
        %v854 = vadd.f32 0.0, %v853
        %v855 = vpop.f32.mrb[0].mxu0
        %v856 = vpop.f32.mrb[0].mxu0
        %v857 = vadd.f32 0.0, %v856
        %v858 = vpop.f32.mrb[0].mxu0
        %859 = vmatprep.mubr.bf16.mxu0 %v600
        %860 = vmatmul.mubr.bf16.gmra.mrb[0].mxu0 %v599
        %v861 = vpop.f32.mrb[0].mxu0
        %v862 = vadd.f32 0.0, %v861
        %v863 = vpop.f32.mrb[0].mxu0
        %v864 = vpop.f32.mrb[0].mxu0
        %v865 = vadd.f32 0.0, %v864
        %v866 = vpop.f32.mrb[0].mxu0
        %867 = vmatprep.mubr.bf16.mxu0 %v602
        %868 = vmatmul.mubr.bf16.gmra.mrb[0].mxu0 %v601
        %v869 = vpop.f32.mrb[0].mxu0
        %v870 = vadd.f32 0.0, %v869
        %v871 = vpop.f32.mrb[0].mxu0
        %v872 = vpop.f32.mrb[0].mxu0
        %v873 = vadd.f32 0.0, %v872
        %v874 = vpop.f32.mrb[0].mxu0
        %875 = vmatprep.mubr.bf16.mxu0 %v604
        %876 = vmatmul.mubr.bf16.gmra.mrb[0].mxu0 %v603
        %v877 = vpop.f32.mrb[0].mxu0
        %v878 = vadd.f32 0.0, %v877
        %v879 = vpop.f32.mrb[0].mxu0
        %v880 = vpop.f32.mrb[0].mxu0
        %v881 = vadd.f32 0.0, %v880
        %v882 = vpop.f32.mrb[0].mxu0
        %883 = vmatprep.mubr.bf16.mxu0 %v606
        %884 = vmatmul.mubr.bf16.gmra.mrb[0].mxu0 %v605
        %v885 = vpop.f32.mrb[0].mxu0
        %v886 = vadd.f32 0.0, %v885
        %v887 = vpop.f32.mrb[0].mxu0
        %v888 = vpop.f32.mrb[0].mxu0
        %v889 = vadd.f32 0.0, %v888
        %v890 = vpop.f32.mrb[0].mxu0
        %891 = vmatprep.mubr.bf16.mxu0 %v608
        %892 = vmatmul.mubr.bf16.gmra.mrb[0].mxu0 %v607
        %v893 = vpop.f32.mrb[0].mxu0
        %v894 = vadd.f32 0.0, %v893
        %v895 = vpop.f32.mrb[0].mxu0
        %v896 = vpop.f32.mrb[0].mxu0
        %v897 = vadd.f32 0.0, %v896
        %v898 = vpop.f32.mrb[0].mxu0
        %899 = vmatprep.mubr.bf16.mxu0 %v610
        %900 = vmatmul.mubr.bf16.gmra.mrb[0].mxu0 %v609
        %v901 = vpop.f32.mrb[0].mxu0
        %v902 = vadd.f32 0.0, %v901
        %v903 = vpop.f32.mrb[0].mxu0
        %v904 = vpop.f32.mrb[0].mxu0
        %v905 = vadd.f32 0.0, %v904
        %v906 = vpop.f32.mrb[0].mxu0
        %907 = vmatprep.mubr.bf16.mxu0 %v612
        %908 = vmatmul.mubr.bf16.gmra.mrb[0].mxu0 %v611
        %v909 = vpop.f32.mrb[0].mxu0
        %v910 = vadd.f32 0.0, %v909
        %v911 = vpop.f32.mrb[0].mxu0
        %v912 = vpop.f32.mrb[0].mxu0
        %v913 = vadd.f32 0.0, %v912
        %v914 = vpop.f32.mrb[0].mxu0
        %915 = vmatprep.mubr.bf16.mxu0 %v614
        %916 = vmatmul.mubr.bf16.gmra.mrb[0].mxu0 %v613
        %v917 = vpop.f32.mrb[0].mxu0
        %v918 = vadd.f32 0.0, %v917
        %v919 = vpop.f32.mrb[0].mxu0
        %v920 = vpop.f32.mrb[0].mxu0
        %v921 = vadd.f32 0.0, %v920
        %v922 = vpop.f32.mrb[0].mxu0
        %923 = vmatprep.mubr.bf16.mxu0 %v616
        %924 = vmatmul.mubr.bf16.gmra.mrb[0].mxu0 %v615
        %v925 = vpop.f32.mrb[0].mxu0
        %v926 = vadd.f32 0.0, %v925
        %v927 = vpop.f32.mrb[0].mxu0
        %v928 = vpop.f32.mrb[0].mxu0
        %v929 = vadd.f32 0.0, %v928
        %v930 = vpop.f32.mrb[0].mxu0
        %931 = vmatprep.mubr.bf16.mxu0 %v618
        %932 = vmatmul.mubr.bf16.gmra.mrb[0].mxu0 %v617
        %v933 = vpop.f32.mrb[0].mxu0
        %v934 = vadd.f32 0.0, %v933
        %v935 = vpop.f32.mrb[0].mxu0
        %v936 = vpop.f32.mrb[0].mxu0
        %v937 = vadd.f32 0.0, %v936
        %v938 = vpop.f32.mrb[0].mxu0
        %939 = vdwg.mxu0
        %v940 = vadd.f32 %v619, %v814
        %v941 = vadd.f32 %v620, %v817
        %v942 = vadd.f32 %v621, %v822
        %v943 = vadd.f32 %v622, %v825
        %v944 = vadd.f32 %v623, %v830
        %v945 = vadd.f32 %v624, %v833
        %v946 = vadd.f32 %v625, %v838
        %v947 = vadd.f32 %v626, %v841
        %v948 = vadd.f32 %v627, %v846
        %v949 = vadd.f32 %v628, %v849
        %v950 = vadd.f32 %v629, %v854
        %v951 = vadd.f32 %v630, %v857
        %v952 = vadd.f32 %v631, %v862
        %v953 = vadd.f32 %v632, %v865
        %v954 = vadd.f32 %v633, %v870
        %v955 = vadd.f32 %v634, %v873
        %v956 = vadd.f32 %v635, %v878
        %v957 = vadd.f32 %v636, %v881
        %v958 = vadd.f32 %v637, %v886
        %v959 = vadd.f32 %v638, %v889
        %v960 = vadd.f32 %v639, %v894
        %v961 = vadd.f32 %v640, %v897
        %v962 = vadd.f32 %v641, %v902
        %v963 = vadd.f32 %v642, %v905
        %v964 = vadd.f32 %v643, %v910
        %v965 = vadd.f32 %v644, %v913
        %v966 = vadd.f32 %v645, %v918
        %v967 = vadd.f32 %v646, %v921
        %v968 = vadd.f32 %v647, %v926
        %v969 = vadd.f32 %v648, %v929
        %v970 = vadd.f32 %v649, %v934
        %v971 = vadd.f32 %v650, %v937
        %972 = vst [vmem:[#allocation2] sm:$0xff] %v940
        %973 = vst [vmem:[#allocation2 + $0x8] sm:$0xff] %v941
        %974 = vst [vmem:[#allocation2 + $0x10] sm:$0xff] %v942
        %975 = vst [vmem:[#allocation2 + $0x18] sm:$0xff] %v943
        %976 = vst [vmem:[#allocation2 + $0x20] sm:$0xff] %v944
        %977 = vst [vmem:[#allocation2 + $0x28] sm:$0xff] %v945
        %978 = vst [vmem:[#allocation2 + $0x30] sm:$0xff] %v946
        %979 = vst [vmem:[#allocation2 + $0x38] sm:$0xff] %v947
        %980 = vst [vmem:[#allocation2 + $0x40] sm:$0xff] %v948
        %981 = vst [vmem:[#allocation2 + $0x48] sm:$0xff] %v949
        %982 = vst [vmem:[#allocation2 + $0x50] sm:$0xff] %v950
        %983 = vst [vmem:[#allocation2 + $0x58] sm:$0xff] %v951
        %984 = vst [vmem:[#allocation2 + $0x60] sm:$0xff] %v952
        %985 = vst [vmem:[#allocation2 + $0x68] sm:$0xff] %v953
        %986 = vst [vmem:[#allocation2 + $0x70] sm:$0xff] %v954
        %987 = vst [vmem:[#allocation2 + $0x78] sm:$0xff] %v955
        %988 = vst [vmem:[#allocation2 + $0x80] sm:$0xff] %v956
        %989 = vst [vmem:[#allocation2 + $0x88] sm:$0xff] %v957
        %990 = vst [vmem:[#allocation2 + $0x90] sm:$0xff] %v958
        %991 = vst [vmem:[#allocation2 + $0x98] sm:$0xff] %v959
        %992 = vst [vmem:[#allocation2 + $0xa0] sm:$0xff] %v960
        %993 = vst [vmem:[#allocation2 + $0xa8] sm:$0xff] %v961
        %994 = vst [vmem:[#allocation2 + $0xb0] sm:$0xff] %v962
        %995 = vst [vmem:[#allocation2 + $0xb8] sm:$0xff] %v963
        %996 = vst [vmem:[#allocation2 + $0xc0] sm:$0xff] %v964
        %997 = vst [vmem:[#allocation2 + $0xc8] sm:$0xff] %v965
        %998 = vst [vmem:[#allocation2 + $0xd0] sm:$0xff] %v966
        %999 = vst [vmem:[#allocation2 + $0xd8] sm:$0xff] %v967
        %1000 = vst [vmem:[#allocation2 + $0xe0] sm:$0xff] %v968
        %1001 = vst [vmem:[#allocation2 + $0xe8] sm:$0xff] %v969
        %1002 = vst [vmem:[#allocation2 + $0xf0] sm:$0xff] %v970
        %1003 = vst [vmem:[#allocation2 + $0xf8] sm:$0xff] %v971
        %p1004 = scmp.eq.s32.totalorder %s38, 2
        // Predicated region
        $region81: #{tpu_custom_call.1} parent=55 // pred_check
          %p1005 = pneg %p1004
        $region82: #{tpu_custom_call.1} parent=55 // pred_check_branch
          %1007 = sbr.rel (%p1005) target = $region84
        $region83: #{tpu_custom_call.1} parent=55 // pred_region
          %v1008 = vld [vmem:[#allocation2] sm:$0xff]
          %v1009 = vld [vmem:[#allocation2 + $0x8] sm:$0xff]
          %v1010 = vld [vmem:[#allocation2 + $0x10] sm:$0xff]
          %v1011 = vld [vmem:[#allocation2 + $0x18] sm:$0xff]
          %v1012 = vld [vmem:[#allocation2 + $0x20] sm:$0xff]
          %v1013 = vld [vmem:[#allocation2 + $0x28] sm:$0xff]
          %v1014 = vld [vmem:[#allocation2 + $0x30] sm:$0xff]
          %v1015 = vld [vmem:[#allocation2 + $0x38] sm:$0xff]
          %v1016 = vld [vmem:[#allocation2 + $0x40] sm:$0xff]
          %v1017 = vld [vmem:[#allocation2 + $0x48] sm:$0xff]
          %v1018 = vld [vmem:[#allocation2 + $0x50] sm:$0xff]
          %v1019 = vld [vmem:[#allocation2 + $0x58] sm:$0xff]
          %v1020 = vld [vmem:[#allocation2 + $0x60] sm:$0xff]
          %v1021 = vld [vmem:[#allocation2 + $0x68] sm:$0xff]
          %v1022 = vld [vmem:[#allocation2 + $0x70] sm:$0xff]
          %v1023 = vld [vmem:[#allocation2 + $0x78] sm:$0xff]
          %v1024 = vld [vmem:[#allocation2 + $0x80] sm:$0xff]
          %v1025 = vld [vmem:[#allocation2 + $0x88] sm:$0xff]
          %v1026 = vld [vmem:[#allocation2 + $0x90] sm:$0xff]
          %v1027 = vld [vmem:[#allocation2 + $0x98] sm:$0xff]
          %v1028 = vld [vmem:[#allocation2 + $0xa0] sm:$0xff]
          %v1029 = vld [vmem:[#allocation2 + $0xa8] sm:$0xff]
          %v1030 = vld [vmem:[#allocation2 + $0xb0] sm:$0xff]
          %v1031 = vld [vmem:[#allocation2 + $0xb8] sm:$0xff]
          %v1032 = vld [vmem:[#allocation2 + $0xc0] sm:$0xff]
          %v1033 = vld [vmem:[#allocation2 + $0xc8] sm:$0xff]
          %v1034 = vld [vmem:[#allocation2 + $0xd0] sm:$0xff]
          %v1035 = vld [vmem:[#allocation2 + $0xd8] sm:$0xff]
          %v1036 = vld [vmem:[#allocation2 + $0xe0] sm:$0xff]
          %v1037 = vld [vmem:[#allocation2 + $0xe8] sm:$0xff]
          %v1038 = vld [vmem:[#allocation2 + $0xf0] sm:$0xff]
          %v1039 = vld [vmem:[#allocation2 + $0xf8] sm:$0xff]
          %v1040 = vld [vmem:[%s530] sm:$0xff]
          %v1041 = vld [vmem:[%s530 + $0x8] sm:$0xff]
          %v1042 = vld [vmem:[%s530 + $0x10] sm:$0xff]
          %v1043 = vld [vmem:[%s530 + $0x18] sm:$0xff]
          %v1044 = vld [vmem:[%s530 + $0x20] sm:$0xff]
          %v1045 = vld [vmem:[%s530 + $0x28] sm:$0xff]
          %v1046 = vld [vmem:[%s530 + $0x30] sm:$0xff]
          %v1047 = vld [vmem:[%s530 + $0x38] sm:$0xff]
          %v1048 = vld [vmem:[%s530 + $0x40] sm:$0xff]
          %v1049 = vld [vmem:[%s530 + $0x48] sm:$0xff]
          %v1050 = vld [vmem:[%s530 + $0x50] sm:$0xff]
          %v1051 = vld [vmem:[%s530 + $0x58] sm:$0xff]
          %v1052 = vld [vmem:[%s530 + $0x60] sm:$0xff]
          %v1053 = vld [vmem:[%s530 + $0x68] sm:$0xff]
          %v1054 = vld [vmem:[%s530 + $0x70] sm:$0xff]
          %v1055 = vld [vmem:[%s530 + $0x78] sm:$0xff]
          %v1056 = vld [vmem:[%s530 + $0x80] sm:$0xff]
          %v1057 = vld [vmem:[%s530 + $0x88] sm:$0xff]
          %v1058 = vld [vmem:[%s530 + $0x90] sm:$0xff]
          %v1059 = vld [vmem:[%s530 + $0x98] sm:$0xff]
          %v1060 = vld [vmem:[%s530 + $0xa0] sm:$0xff]
          %v1061 = vld [vmem:[%s530 + $0xa8] sm:$0xff]
          %v1062 = vld [vmem:[%s530 + $0xb0] sm:$0xff]
          %v1063 = vld [vmem:[%s530 + $0xb8] sm:$0xff]
          %v1064 = vld [vmem:[%s530 + $0xc0] sm:$0xff]
          %v1065 = vld [vmem:[%s530 + $0xc8] sm:$0xff]
          %v1066 = vld [vmem:[%s530 + $0xd0] sm:$0xff]
          %v1067 = vld [vmem:[%s530 + $0xd8] sm:$0xff]
          %v1068 = vld [vmem:[%s530 + $0xe0] sm:$0xff]
          %v1069 = vld [vmem:[%s530 + $0xe8] sm:$0xff]
          %v1070 = vld [vmem:[%s530 + $0xf0] sm:$0xff]
          %v1071 = vld [vmem:[%s530 + $0xf8] sm:$0xff]
          %1073 = vset.pattern.permute.xlu0 0
          %1074 = vperm.xlu0 %1073, %v1040
          %v1075 = vpop.permute.xlu0 %1074
          %1078 = vset.pattern.permute.xlu0 0
          %1079 = vperm.xlu0 %1078, %v1041
          %v1080 = vpop.permute.xlu0 %1079
          %1083 = vset.pattern.permute.xlu0 0
          %1084 = vperm.xlu0 %1083, %v1042
          %v1085 = vpop.permute.xlu0 %1084
          %1088 = vset.pattern.permute.xlu0 0
          %1089 = vperm.xlu0 %1088, %v1043
          %v1090 = vpop.permute.xlu0 %1089
          %1093 = vset.pattern.permute.xlu0 0
          %1094 = vperm.xlu0 %1093, %v1044
          %v1095 = vpop.permute.xlu0 %1094
          %1098 = vset.pattern.permute.xlu0 0
          %1099 = vperm.xlu0 %1098, %v1045
          %v1100 = vpop.permute.xlu0 %1099
          %1103 = vset.pattern.permute.xlu0 0
          %1104 = vperm.xlu0 %1103, %v1046
          %v1105 = vpop.permute.xlu0 %1104
          %1108 = vset.pattern.permute.xlu0 0
          %1109 = vperm.xlu0 %1108, %v1047
          %v1110 = vpop.permute.xlu0 %1109
          %1113 = vset.pattern.permute.xlu0 0
          %1114 = vperm.xlu0 %1113, %v1048
          %v1115 = vpop.permute.xlu0 %1114
          %1118 = vset.pattern.permute.xlu0 0
          %1119 = vperm.xlu0 %1118, %v1049
          %v1120 = vpop.permute.xlu0 %1119
          %1123 = vset.pattern.permute.xlu0 0
          %1124 = vperm.xlu0 %1123, %v1050
          %v1125 = vpop.permute.xlu0 %1124
          %1128 = vset.pattern.permute.xlu0 0
          %1129 = vperm.xlu0 %1128, %v1051
          %v1130 = vpop.permute.xlu0 %1129
          %1133 = vset.pattern.permute.xlu0 0
          %1134 = vperm.xlu0 %1133, %v1052
          %v1135 = vpop.permute.xlu0 %1134
          %1138 = vset.pattern.permute.xlu0 0
          %1139 = vperm.xlu0 %1138, %v1053
          %v1140 = vpop.permute.xlu0 %1139
          %1143 = vset.pattern.permute.xlu0 0
          %1144 = vperm.xlu0 %1143, %v1054
          %v1145 = vpop.permute.xlu0 %1144
          %1148 = vset.pattern.permute.xlu0 0
          %1149 = vperm.xlu0 %1148, %v1055
          %v1150 = vpop.permute.xlu0 %1149
          %1153 = vset.pattern.permute.xlu0 0
          %1154 = vperm.xlu0 %1153, %v1056
          %v1155 = vpop.permute.xlu0 %1154
          %1158 = vset.pattern.permute.xlu0 0
          %1159 = vperm.xlu0 %1158, %v1057
          %v1160 = vpop.permute.xlu0 %1159
          %1163 = vset.pattern.permute.xlu0 0
          %1164 = vperm.xlu0 %1163, %v1058
          %v1165 = vpop.permute.xlu0 %1164
          %1168 = vset.pattern.permute.xlu0 0
          %1169 = vperm.xlu0 %1168, %v1059
          %v1170 = vpop.permute.xlu0 %1169
          %1173 = vset.pattern.permute.xlu0 0
          %1174 = vperm.xlu0 %1173, %v1060
          %v1175 = vpop.permute.xlu0 %1174
          %1178 = vset.pattern.permute.xlu0 0
          %1179 = vperm.xlu0 %1178, %v1061
          %v1180 = vpop.permute.xlu0 %1179
          %1183 = vset.pattern.permute.xlu0 0
          %1184 = vperm.xlu0 %1183, %v1062
          %v1185 = vpop.permute.xlu0 %1184
          %1188 = vset.pattern.permute.xlu0 0
          %1189 = vperm.xlu0 %1188, %v1063
          %v1190 = vpop.permute.xlu0 %1189
          %1193 = vset.pattern.permute.xlu0 0
          %1194 = vperm.xlu0 %1193, %v1064
          %v1195 = vpop.permute.xlu0 %1194
          %1198 = vset.pattern.permute.xlu0 0
          %1199 = vperm.xlu0 %1198, %v1065
          %v1200 = vpop.permute.xlu0 %1199
          %1203 = vset.pattern.permute.xlu0 0
          %1204 = vperm.xlu0 %1203, %v1066
          %v1205 = vpop.permute.xlu0 %1204
          %1208 = vset.pattern.permute.xlu0 0
          %1209 = vperm.xlu0 %1208, %v1067
          %v1210 = vpop.permute.xlu0 %1209
          %1213 = vset.pattern.permute.xlu0 0
          %1214 = vperm.xlu0 %1213, %v1068
          %v1215 = vpop.permute.xlu0 %1214
          %1218 = vset.pattern.permute.xlu0 0
          %1219 = vperm.xlu0 %1218, %v1069
          %v1220 = vpop.permute.xlu0 %1219
          %1223 = vset.pattern.permute.xlu0 0
          %1224 = vperm.xlu0 %1223, %v1070
          %v1225 = vpop.permute.xlu0 %1224
          %1228 = vset.pattern.permute.xlu0 0
          %1229 = vperm.xlu0 %1228, %v1071
          %v1230 = vpop.permute.xlu0 %1229
          %v1232 = vmul.f32 %v1008, %v1075
          %v1233 = vmul.f32 %v1009, %v1080
          %v1234 = vmul.f32 %v1010, %v1085
          %v1235 = vmul.f32 %v1011, %v1090
          %v1236 = vmul.f32 %v1012, %v1095
          %v1237 = vmul.f32 %v1013, %v1100
          %v1238 = vmul.f32 %v1014, %v1105
          %v1239 = vmul.f32 %v1015, %v1110
          %v1240 = vmul.f32 %v1016, %v1115
          %v1241 = vmul.f32 %v1017, %v1120
          %v1242 = vmul.f32 %v1018, %v1125
          %v1243 = vmul.f32 %v1019, %v1130
          %v1244 = vmul.f32 %v1020, %v1135
          %v1245 = vmul.f32 %v1021, %v1140
          %v1246 = vmul.f32 %v1022, %v1145
          %v1247 = vmul.f32 %v1023, %v1150
          %v1248 = vmul.f32 %v1024, %v1155
          %v1249 = vmul.f32 %v1025, %v1160
          %v1250 = vmul.f32 %v1026, %v1165
          %v1251 = vmul.f32 %v1027, %v1170
          %v1252 = vmul.f32 %v1028, %v1175
          %v1253 = vmul.f32 %v1029, %v1180
          %v1254 = vmul.f32 %v1030, %v1185
          %v1255 = vmul.f32 %v1031, %v1190
          %v1256 = vmul.f32 %v1032, %v1195
          %v1257 = vmul.f32 %v1033, %v1200
          %v1258 = vmul.f32 %v1034, %v1205
          %v1259 = vmul.f32 %v1035, %v1210
          %v1260 = vmul.f32 %v1036, %v1215
          %v1261 = vmul.f32 %v1037, %v1220
          %v1262 = vmul.f32 %v1038, %v1225
          %v1263 = vmul.f32 %v1039, %v1230
          %v1264 = vpack.c.bf16 %v1233, %v1232
          %v1265 = vpack.c.bf16 %v1235, %v1234
          %v1266 = vpack.c.bf16 %v1237, %v1236
          %v1267 = vpack.c.bf16 %v1239, %v1238
          %v1268 = vpack.c.bf16 %v1241, %v1240
          %v1269 = vpack.c.bf16 %v1243, %v1242
          %v1270 = vpack.c.bf16 %v1245, %v1244
          %v1271 = vpack.c.bf16 %v1247, %v1246
          %v1272 = vpack.c.bf16 %v1249, %v1248
          %v1273 = vpack.c.bf16 %v1251, %v1250
          %v1274 = vpack.c.bf16 %v1253, %v1252
          %v1275 = vpack.c.bf16 %v1255, %v1254
          %v1276 = vpack.c.bf16 %v1257, %v1256
          %v1277 = vpack.c.bf16 %v1259, %v1258
          %v1278 = vpack.c.bf16 %v1261, %v1260
          %v1279 = vpack.c.bf16 %v1263, %v1262
          %v1280 = vld [vmem:[#allocation6] sm:$0xf]
          %v1281 = vld [vmem:[#allocation6 + $0x4] sm:$0xf]
          %v1282 = vld [vmem:[#allocation6 + $0x8] sm:$0xf]
          %v1283 = vld [vmem:[#allocation6 + $0xc] sm:$0xf]
          %v1284 = vld [vmem:[#allocation6 + $0x10] sm:$0xf]
          %v1285 = vld [vmem:[#allocation6 + $0x14] sm:$0xf]
          %v1286 = vld [vmem:[#allocation6 + $0x18] sm:$0xf]
          %v1287 = vld [vmem:[#allocation6 + $0x1c] sm:$0xf]
          %v1288 = vld [vmem:[#allocation6 + $0x20] sm:$0xf]
          %v1289 = vld [vmem:[#allocation6 + $0x24] sm:$0xf]
          %v1290 = vld [vmem:[#allocation6 + $0x28] sm:$0xf]
          %v1291 = vld [vmem:[#allocation6 + $0x2c] sm:$0xf]
          %v1292 = vld [vmem:[#allocation6 + $0x30] sm:$0xf]
          %v1293 = vld [vmem:[#allocation6 + $0x34] sm:$0xf]
          %v1294 = vld [vmem:[#allocation6 + $0x38] sm:$0xf]
          %v1295 = vld [vmem:[#allocation6 + $0x3c] sm:$0xf]
          %v1296 = vld [vmem:[%s524] sm:$0xf]
          %v1297 = vld [vmem:[%s524 + $0x4] sm:$0xf]
          %v1298 = vld [vmem:[%s524 + $0x8] sm:$0xf]
          %v1299 = vld [vmem:[%s524 + $0xc] sm:$0xf]
          %v1300 = vld [vmem:[%s524 + $0x10] sm:$0xf]
          %v1301 = vld [vmem:[%s524 + $0x14] sm:$0xf]
          %v1302 = vld [vmem:[%s524 + $0x18] sm:$0xf]
          %v1303 = vld [vmem:[%s524 + $0x1c] sm:$0xf]
          %v1304 = vld [vmem:[%s524 + $0x20] sm:$0xf]
          %v1305 = vld [vmem:[%s524 + $0x24] sm:$0xf]
          %v1306 = vld [vmem:[%s524 + $0x28] sm:$0xf]
          %v1307 = vld [vmem:[%s524 + $0x2c] sm:$0xf]
          %v1308 = vld [vmem:[%s524 + $0x30] sm:$0xf]
          %v1309 = vld [vmem:[%s524 + $0x34] sm:$0xf]
          %v1310 = vld [vmem:[%s524 + $0x38] sm:$0xf]
          %v1311 = vld [vmem:[%s524 + $0x3c] sm:$0xf]
          %v1312 = vld [vmem:[%s524 + $0x40] sm:$0xf]
          %v1313 = vld [vmem:[%s524 + $0x44] sm:$0xf]
          %v1314 = vld [vmem:[%s524 + $0x48] sm:$0xf]
          %v1315 = vld [vmem:[%s524 + $0x4c] sm:$0xf]
          %v1316 = vld [vmem:[%s524 + $0x50] sm:$0xf]
          %v1317 = vld [vmem:[%s524 + $0x54] sm:$0xf]
          %v1318 = vld [vmem:[%s524 + $0x58] sm:$0xf]
          %v1319 = vld [vmem:[%s524 + $0x5c] sm:$0xf]
          %v1320 = vld [vmem:[%s524 + $0x60] sm:$0xf]
          %v1321 = vld [vmem:[%s524 + $0x64] sm:$0xf]
          %v1322 = vld [vmem:[%s524 + $0x68] sm:$0xf]
          %v1323 = vld [vmem:[%s524 + $0x6c] sm:$0xf]
          %v1324 = vld [vmem:[%s524 + $0x70] sm:$0xf]
          %v1325 = vld [vmem:[%s524 + $0x74] sm:$0xf]
          %v1326 = vld [vmem:[%s524 + $0x78] sm:$0xf]
          %v1327 = vld [vmem:[%s524 + $0x7c] sm:$0xf]
          %v1328 = vld [vmem:[#allocation8] sm:$0xf]
          %v1329 = vld [vmem:[#allocation8 + $0x4] sm:$0xf]
          %v1330 = vld [vmem:[#allocation8 + $0x8] sm:$0xf]
          %v1331 = vld [vmem:[#allocation8 + $0xc] sm:$0xf]
          %v1332 = vld [vmem:[#allocation8 + $0x10] sm:$0xf]
          %v1333 = vld [vmem:[#allocation8 + $0x14] sm:$0xf]
          %v1334 = vld [vmem:[#allocation8 + $0x18] sm:$0xf]
          %v1335 = vld [vmem:[#allocation8 + $0x1c] sm:$0xf]
          %v1336 = vld [vmem:[#allocation8 + $0x20] sm:$0xf]
          %v1337 = vld [vmem:[#allocation8 + $0x24] sm:$0xf]
          %v1338 = vld [vmem:[#allocation8 + $0x28] sm:$0xf]
          %v1339 = vld [vmem:[#allocation8 + $0x2c] sm:$0xf]
          %v1340 = vld [vmem:[#allocation8 + $0x30] sm:$0xf]
          %v1341 = vld [vmem:[#allocation8 + $0x34] sm:$0xf]
          %v1342 = vld [vmem:[#allocation8 + $0x38] sm:$0xf]
          %v1343 = vld [vmem:[#allocation8 + $0x3c] sm:$0xf]
          %v1376 = vunpack.c.l.b16 %v1296
          %v1377 = vunpack.c.l.b16 %v1297
          %v1378 = vunpack.c.l.b16 %v1298
          %v1379 = vunpack.c.l.b16 %v1299
          %v1380 = vunpack.c.l.b16 %v1300
          %v1381 = vunpack.c.l.b16 %v1301
          %v1382 = vunpack.c.l.b16 %v1302
          %v1383 = vunpack.c.l.b16 %v1303
          %v1384 = vunpack.c.l.b16 %v1304
          %v1385 = vunpack.c.l.b16 %v1305
          %v1386 = vunpack.c.l.b16 %v1306
          %v1387 = vunpack.c.l.b16 %v1307
          %v1388 = vunpack.c.l.b16 %v1308
          %v1389 = vunpack.c.l.b16 %v1309
          %v1390 = vunpack.c.l.b16 %v1310
          %v1391 = vunpack.c.l.b16 %v1311
          %v1392 = vunpack.c.l.b16 %v1312
          %v1393 = vunpack.c.l.b16 %v1313
          %v1394 = vunpack.c.l.b16 %v1314
          %v1395 = vunpack.c.l.b16 %v1315
          %v1396 = vunpack.c.l.b16 %v1316
          %v1397 = vunpack.c.l.b16 %v1317
          %v1398 = vunpack.c.l.b16 %v1318
          %v1399 = vunpack.c.l.b16 %v1319
          %v1400 = vunpack.c.l.b16 %v1320
          %v1401 = vunpack.c.l.b16 %v1321
          %v1402 = vunpack.c.l.b16 %v1322
          %v1403 = vunpack.c.l.b16 %v1323
          %v1404 = vunpack.c.l.b16 %v1324
          %v1405 = vunpack.c.l.b16 %v1325
          %v1406 = vunpack.c.l.b16 %v1326
          %v1407 = vunpack.c.l.b16 %v1327
          %v1408 = vpack.c.b16 %v1377, %v1376
          %v1409 = vpack.c.b16 %v1379, %v1378
          %v1410 = vpack.c.b16 %v1381, %v1380
          %v1411 = vpack.c.b16 %v1383, %v1382
          %v1412 = vpack.c.b16 %v1385, %v1384
          %v1413 = vpack.c.b16 %v1387, %v1386
          %v1414 = vpack.c.b16 %v1389, %v1388
          %v1415 = vpack.c.b16 %v1391, %v1390
          %v1416 = vpack.c.b16 %v1393, %v1392
          %v1417 = vpack.c.b16 %v1395, %v1394
          %v1418 = vpack.c.b16 %v1397, %v1396
          %v1419 = vpack.c.b16 %v1399, %v1398
          %v1420 = vpack.c.b16 %v1401, %v1400
          %v1421 = vpack.c.b16 %v1403, %v1402
          %v1422 = vpack.c.b16 %v1405, %v1404
          %v1423 = vpack.c.b16 %v1407, %v1406
          %v1456 = vunpack.c.l.b16 %v1328
          %v1457 = vunpack.c.l.b16 %v1329
          %v1458 = vunpack.c.l.b16 %v1330
          %v1459 = vunpack.c.l.b16 %v1331
          %v1460 = vunpack.c.l.b16 %v1332
          %v1461 = vunpack.c.l.b16 %v1333
          %v1462 = vunpack.c.l.b16 %v1334
          %v1463 = vunpack.c.l.b16 %v1335
          %v1464 = vunpack.c.l.b16 %v1336
          %v1465 = vunpack.c.l.b16 %v1337
          %v1466 = vunpack.c.l.b16 %v1338
          %v1467 = vunpack.c.l.b16 %v1339
          %v1468 = vunpack.c.l.b16 %v1340
          %v1469 = vunpack.c.l.b16 %v1341
          %v1470 = vunpack.c.l.b16 %v1342
          %v1471 = vunpack.c.l.b16 %v1343
          %v1472 = vpack.c.b16 %v1457, %v1456
          %v1473 = vpack.c.b16 %v1459, %v1458
          %v1474 = vpack.c.b16 %v1461, %v1460
          %v1475 = vpack.c.b16 %v1463, %v1462
          %v1476 = vpack.c.b16 %v1465, %v1464
          %v1477 = vpack.c.b16 %v1467, %v1466
          %v1478 = vpack.c.b16 %v1469, %v1468
          %v1479 = vpack.c.b16 %v1471, %v1470
          %1488 = vmatprep.subr.bf16.mxu0 0
          %1489 = vmatpush1.bf16.msra.mxu0 %v1472
          %1490 = vmatprep.subr.bf16.mxu0 0
          %1491 = vmatpush1.bf16.msra.mxu0 %v1473
          %1492 = vmatprep.subr.bf16.mxu0 0
          %1493 = vmatpush1.bf16.msra.mxu0 %v1474
          %1494 = vmatprep.subr.bf16.mxu0 0
          %1495 = vmatpush1.bf16.msra.mxu0 %v1475
          %1496 = vmatprep.subr.bf16.mxu0 0
          %1497 = vmatpush1.bf16.msra.mxu0 %v1476
          %1498 = vmatprep.subr.bf16.mxu0 0
          %1499 = vmatpush1.bf16.msra.mxu0 %v1477
          %1500 = vmatprep.subr.bf16.mxu0 0
          %1501 = vmatpush1.bf16.msra.mxu0 %v1478
          %1502 = vmatprep.subr.bf16.mxu0 0
          %1503 = vmatpush1.bf16.msra.mxu0 %v1479
          %1504 = vmatprep.subr.bf16.mxu0 0
          %1505 = vmatpush1.bf16.msra.mxu0 0
          %1506 = vmatprep.subr.bf16.mxu0 0
          %1507 = vmatpush1.bf16.msra.mxu0 0
          %1508 = vmatprep.subr.bf16.mxu0 0
          %1509 = vmatpush1.bf16.msra.mxu0 0
          %1510 = vmatprep.subr.bf16.mxu0 0
          %1511 = vmatpush1.bf16.msra.mxu0 0
          %1512 = vmatprep.subr.bf16.mxu0 0
          %1513 = vmatpush1.bf16.msra.mxu0 0
          %1514 = vmatprep.subr.bf16.mxu0 0
          %1515 = vmatpush1.bf16.msra.mxu0 0
          %1516 = vmatprep.subr.bf16.mxu0 0
          %1517 = vmatpush1.bf16.msra.mxu0 0
          %1518 = vmatprep.subr.bf16.mxu0 0
          %1519 = vmatpush1.bf16.msra.mxu0 0
          %1520 = vmatprep.mubr.bf16.mxu0 0
          %1521 = vmatmul.mubr.bf16.gmra.mrb[0].mxu0 %v1408
          %v1522 = vpop.f32.mrb[0].mxu0
          %v1523 = vadd.f32 0.0, %v1522
          %v1524 = vpop.f32.mrb[0].mxu0
          %v1525 = vpop.f32.mrb[0].mxu0
          %v1526 = vadd.f32 0.0, %v1525
          %v1527 = vpop.f32.mrb[0].mxu0
          %1528 = vmatprep.mubr.bf16.mxu0 0
          %1529 = vmatmul.mubr.bf16.gmra.mrb[0].mxu0 %v1409
          %v1530 = vpop.f32.mrb[0].mxu0
          %v1531 = vadd.f32 0.0, %v1530
          %v1532 = vpop.f32.mrb[0].mxu0
          %v1533 = vpop.f32.mrb[0].mxu0
          %v1534 = vadd.f32 0.0, %v1533
          %v1535 = vpop.f32.mrb[0].mxu0
          %1536 = vmatprep.mubr.bf16.mxu0 0
          %1537 = vmatmul.mubr.bf16.gmra.mrb[0].mxu0 %v1410
          %v1538 = vpop.f32.mrb[0].mxu0
          %v1539 = vadd.f32 0.0, %v1538
          %v1540 = vpop.f32.mrb[0].mxu0
          %v1541 = vpop.f32.mrb[0].mxu0
          %v1542 = vadd.f32 0.0, %v1541
          %v1543 = vpop.f32.mrb[0].mxu0
          %1544 = vmatprep.mubr.bf16.mxu0 0
          %1545 = vmatmul.mubr.bf16.gmra.mrb[0].mxu0 %v1411
          %v1546 = vpop.f32.mrb[0].mxu0
          %v1547 = vadd.f32 0.0, %v1546
          %v1548 = vpop.f32.mrb[0].mxu0
          %v1549 = vpop.f32.mrb[0].mxu0
          %v1550 = vadd.f32 0.0, %v1549
          %v1551 = vpop.f32.mrb[0].mxu0
          %1552 = vmatprep.mubr.bf16.mxu0 0
          %1553 = vmatmul.mubr.bf16.gmra.mrb[0].mxu0 %v1412
          %v1554 = vpop.f32.mrb[0].mxu0
          %v1555 = vadd.f32 0.0, %v1554
          %v1556 = vpop.f32.mrb[0].mxu0
          %v1557 = vpop.f32.mrb[0].mxu0
          %v1558 = vadd.f32 0.0, %v1557
          %v1559 = vpop.f32.mrb[0].mxu0
          %1560 = vmatprep.mubr.bf16.mxu0 0
          %1561 = vmatmul.mubr.bf16.gmra.mrb[0].mxu0 %v1413
          %v1562 = vpop.f32.mrb[0].mxu0
          %v1563 = vadd.f32 0.0, %v1562
          %v1564 = vpop.f32.mrb[0].mxu0
          %v1565 = vpop.f32.mrb[0].mxu0
          %v1566 = vadd.f32 0.0, %v1565
          %v1567 = vpop.f32.mrb[0].mxu0
          %1568 = vmatprep.mubr.bf16.mxu0 0
          %1569 = vmatmul.mubr.bf16.gmra.mrb[0].mxu0 %v1414
          %v1570 = vpop.f32.mrb[0].mxu0
          %v1571 = vadd.f32 0.0, %v1570
          %v1572 = vpop.f32.mrb[0].mxu0
          %v1573 = vpop.f32.mrb[0].mxu0
          %v1574 = vadd.f32 0.0, %v1573
          %v1575 = vpop.f32.mrb[0].mxu0
          %1576 = vmatprep.mubr.bf16.mxu0 0
          %1577 = vmatmul.mubr.bf16.gmra.mrb[0].mxu0 %v1415
          %v1578 = vpop.f32.mrb[0].mxu0
          %v1579 = vadd.f32 0.0, %v1578
          %v1580 = vpop.f32.mrb[0].mxu0
          %v1581 = vpop.f32.mrb[0].mxu0
          %v1582 = vadd.f32 0.0, %v1581
          %v1583 = vpop.f32.mrb[0].mxu0
          %1584 = vmatprep.mubr.bf16.mxu0 0
          %1585 = vmatmul.mubr.bf16.gmra.mrb[0].mxu0 %v1416
          %v1586 = vpop.f32.mrb[0].mxu0
          %v1587 = vadd.f32 0.0, %v1586
          %v1588 = vpop.f32.mrb[0].mxu0
          %v1589 = vpop.f32.mrb[0].mxu0
          %v1590 = vadd.f32 0.0, %v1589
          %v1591 = vpop.f32.mrb[0].mxu0
          %1592 = vmatprep.mubr.bf16.mxu0 0
          %1593 = vmatmul.mubr.bf16.gmra.mrb[0].mxu0 %v1417
          %v1594 = vpop.f32.mrb[0].mxu0
          %v1595 = vadd.f32 0.0, %v1594
          %v1596 = vpop.f32.mrb[0].mxu0
          %v1597 = vpop.f32.mrb[0].mxu0
          %v1598 = vadd.f32 0.0, %v1597
          %v1599 = vpop.f32.mrb[0].mxu0
          %1600 = vmatprep.mubr.bf16.mxu0 0
          %1601 = vmatmul.mubr.bf16.gmra.mrb[0].mxu0 %v1418
          %v1602 = vpop.f32.mrb[0].mxu0
          %v1603 = vadd.f32 0.0, %v1602
          %v1604 = vpop.f32.mrb[0].mxu0
          %v1605 = vpop.f32.mrb[0].mxu0
          %v1606 = vadd.f32 0.0, %v1605
          %v1607 = vpop.f32.mrb[0].mxu0
          %1608 = vmatprep.mubr.bf16.mxu0 0
          %1609 = vmatmul.mubr.bf16.gmra.mrb[0].mxu0 %v1419
          %v1610 = vpop.f32.mrb[0].mxu0
          %v1611 = vadd.f32 0.0, %v1610
          %v1612 = vpop.f32.mrb[0].mxu0
          %v1613 = vpop.f32.mrb[0].mxu0
          %v1614 = vadd.f32 0.0, %v1613
          %v1615 = vpop.f32.mrb[0].mxu0
          %1616 = vmatprep.mubr.bf16.mxu0 0
          %1617 = vmatmul.mubr.bf16.gmra.mrb[0].mxu0 %v1420
          %v1618 = vpop.f32.mrb[0].mxu0
          %v1619 = vadd.f32 0.0, %v1618
          %v1620 = vpop.f32.mrb[0].mxu0
          %v1621 = vpop.f32.mrb[0].mxu0
          %v1622 = vadd.f32 0.0, %v1621
          %v1623 = vpop.f32.mrb[0].mxu0
          %1624 = vmatprep.mubr.bf16.mxu0 0
          %1625 = vmatmul.mubr.bf16.gmra.mrb[0].mxu0 %v1421
          %v1626 = vpop.f32.mrb[0].mxu0
          %v1627 = vadd.f32 0.0, %v1626
          %v1628 = vpop.f32.mrb[0].mxu0
          %v1629 = vpop.f32.mrb[0].mxu0
          %v1630 = vadd.f32 0.0, %v1629
          %v1631 = vpop.f32.mrb[0].mxu0
          %1632 = vmatprep.mubr.bf16.mxu0 0
          %1633 = vmatmul.mubr.bf16.gmra.mrb[0].mxu0 %v1422
          %v1634 = vpop.f32.mrb[0].mxu0
          %v1635 = vadd.f32 0.0, %v1634
          %v1636 = vpop.f32.mrb[0].mxu0
          %v1637 = vpop.f32.mrb[0].mxu0
          %v1638 = vadd.f32 0.0, %v1637
          %v1639 = vpop.f32.mrb[0].mxu0
          %1640 = vmatprep.mubr.bf16.mxu0 0
          %1641 = vmatmul.mubr.bf16.gmra.mrb[0].mxu0 %v1423
          %v1642 = vpop.f32.mrb[0].mxu0
          %v1643 = vadd.f32 0.0, %v1642
          %v1644 = vpop.f32.mrb[0].mxu0
          %v1645 = vpop.f32.mrb[0].mxu0
          %v1646 = vadd.f32 0.0, %v1645
          %v1647 = vpop.f32.mrb[0].mxu0
          %1648 = vdwg.mxu0
          %v1665 = vunpack.c.l.b16 %v1280
          %v1666 = vunpack.c.l.b16 %v1281
          %v1667 = vunpack.c.l.b16 %v1282
          %v1668 = vunpack.c.l.b16 %v1283
          %v1669 = vunpack.c.l.b16 %v1284
          %v1670 = vunpack.c.l.b16 %v1285
          %v1671 = vunpack.c.l.b16 %v1286
          %v1672 = vunpack.c.l.b16 %v1287
          %v1673 = vunpack.c.l.b16 %v1288
          %v1674 = vunpack.c.l.b16 %v1289
          %v1675 = vunpack.c.l.b16 %v1290
          %v1676 = vunpack.c.l.b16 %v1291
          %v1677 = vunpack.c.l.b16 %v1292
          %v1678 = vunpack.c.l.b16 %v1293
          %v1679 = vunpack.c.l.b16 %v1294
          %v1680 = vunpack.c.l.b16 %v1295
          %v1681 = vpack.c.b16 %v1666, %v1665
          %v1682 = vpack.c.b16 %v1668, %v1667
          %v1683 = vpack.c.b16 %v1670, %v1669
          %v1684 = vpack.c.b16 %v1672, %v1671
          %v1685 = vpack.c.b16 %v1674, %v1673
          %v1686 = vpack.c.b16 %v1676, %v1675
          %v1687 = vpack.c.b16 %v1678, %v1677
          %v1688 = vpack.c.b16 %v1680, %v1679
          %1697 = vmatprep.subr.bf16.mxu0 0
          %1698 = vmatpush1.bf16.msra.mxu0 %v1681
          %1699 = vmatprep.subr.bf16.mxu0 0
          %1700 = vmatpush1.bf16.msra.mxu0 %v1682
          %1701 = vmatprep.subr.bf16.mxu0 0
          %1702 = vmatpush1.bf16.msra.mxu0 %v1683
          %1703 = vmatprep.subr.bf16.mxu0 0
          %1704 = vmatpush1.bf16.msra.mxu0 %v1684
          %1705 = vmatprep.subr.bf16.mxu0 0
          %1706 = vmatpush1.bf16.msra.mxu0 %v1685
          %1707 = vmatprep.subr.bf16.mxu0 0
          %1708 = vmatpush1.bf16.msra.mxu0 %v1686
          %1709 = vmatprep.subr.bf16.mxu0 0
          %1710 = vmatpush1.bf16.msra.mxu0 %v1687
          %1711 = vmatprep.subr.bf16.mxu0 0
          %1712 = vmatpush1.bf16.msra.mxu0 %v1688
          %1713 = vmatprep.subr.bf16.mxu0 0
          %1714 = vmatpush1.bf16.msra.mxu0 0
          %1715 = vmatprep.subr.bf16.mxu0 0
          %1716 = vmatpush1.bf16.msra.mxu0 0
          %1717 = vmatprep.subr.bf16.mxu0 0
          %1718 = vmatpush1.bf16.msra.mxu0 0
          %1719 = vmatprep.subr.bf16.mxu0 0
          %1720 = vmatpush1.bf16.msra.mxu0 0
          %1721 = vmatprep.subr.bf16.mxu0 0
          %1722 = vmatpush1.bf16.msra.mxu0 0
          %1723 = vmatprep.subr.bf16.mxu0 0
          %1724 = vmatpush1.bf16.msra.mxu0 0
          %1725 = vmatprep.subr.bf16.mxu0 0
          %1726 = vmatpush1.bf16.msra.mxu0 0
          %1727 = vmatprep.subr.bf16.mxu0 0
          %1728 = vmatpush1.bf16.msra.mxu0 0
          %1729 = vmatprep.mubr.bf16.mxu0 0
          %1730 = vmatmul.mubr.bf16.gmra.mrb[0].mxu0 %v1264
          %v1731 = vpop.f32.mrb[0].mxu0
          %v1732 = vadd.f32 %v1523, %v1731
          %v1733 = vpop.f32.mrb[0].mxu0
          %v1734 = vpop.f32.mrb[0].mxu0
          %v1735 = vadd.f32 %v1526, %v1734
          %v1736 = vpop.f32.mrb[0].mxu0
          %1737 = vmatprep.mubr.bf16.mxu0 0
          %1738 = vmatmul.mubr.bf16.gmra.mrb[0].mxu0 %v1265
          %v1739 = vpop.f32.mrb[0].mxu0
          %v1740 = vadd.f32 %v1531, %v1739
          %v1741 = vpop.f32.mrb[0].mxu0
          %v1742 = vpop.f32.mrb[0].mxu0
          %v1743 = vadd.f32 %v1534, %v1742
          %v1744 = vpop.f32.mrb[0].mxu0
          %1745 = vmatprep.mubr.bf16.mxu0 0
          %1746 = vmatmul.mubr.bf16.gmra.mrb[0].mxu0 %v1266
          %v1747 = vpop.f32.mrb[0].mxu0
          %v1748 = vadd.f32 %v1539, %v1747
          %v1749 = vpop.f32.mrb[0].mxu0
          %v1750 = vpop.f32.mrb[0].mxu0
          %v1751 = vadd.f32 %v1542, %v1750
          %v1752 = vpop.f32.mrb[0].mxu0
          %1753 = vmatprep.mubr.bf16.mxu0 0
          %1754 = vmatmul.mubr.bf16.gmra.mrb[0].mxu0 %v1267
          %v1755 = vpop.f32.mrb[0].mxu0
          %v1756 = vadd.f32 %v1547, %v1755
          %v1757 = vpop.f32.mrb[0].mxu0
          %v1758 = vpop.f32.mrb[0].mxu0
          %v1759 = vadd.f32 %v1550, %v1758
          %v1760 = vpop.f32.mrb[0].mxu0
          %1761 = vmatprep.mubr.bf16.mxu0 0
          %1762 = vmatmul.mubr.bf16.gmra.mrb[0].mxu0 %v1268
          %v1763 = vpop.f32.mrb[0].mxu0
          %v1764 = vadd.f32 %v1555, %v1763
          %v1765 = vpop.f32.mrb[0].mxu0
          %v1766 = vpop.f32.mrb[0].mxu0
          %v1767 = vadd.f32 %v1558, %v1766
          %v1768 = vpop.f32.mrb[0].mxu0
          %1769 = vmatprep.mubr.bf16.mxu0 0
          %1770 = vmatmul.mubr.bf16.gmra.mrb[0].mxu0 %v1269
          %v1771 = vpop.f32.mrb[0].mxu0
          %v1772 = vadd.f32 %v1563, %v1771
          %v1773 = vpop.f32.mrb[0].mxu0
          %v1774 = vpop.f32.mrb[0].mxu0
          %v1775 = vadd.f32 %v1566, %v1774
          %v1776 = vpop.f32.mrb[0].mxu0
          %1777 = vmatprep.mubr.bf16.mxu0 0
          %1778 = vmatmul.mubr.bf16.gmra.mrb[0].mxu0 %v1270
          %v1779 = vpop.f32.mrb[0].mxu0
          %v1780 = vadd.f32 %v1571, %v1779
          %v1781 = vpop.f32.mrb[0].mxu0
          %v1782 = vpop.f32.mrb[0].mxu0
          %v1783 = vadd.f32 %v1574, %v1782
          %v1784 = vpop.f32.mrb[0].mxu0
          %1785 = vmatprep.mubr.bf16.mxu0 0
          %1786 = vmatmul.mubr.bf16.gmra.mrb[0].mxu0 %v1271
          %v1787 = vpop.f32.mrb[0].mxu0
          %v1788 = vadd.f32 %v1579, %v1787
          %v1789 = vpop.f32.mrb[0].mxu0
          %v1790 = vpop.f32.mrb[0].mxu0
          %v1791 = vadd.f32 %v1582, %v1790
          %v1792 = vpop.f32.mrb[0].mxu0
          %1793 = vmatprep.mubr.bf16.mxu0 0
          %1794 = vmatmul.mubr.bf16.gmra.mrb[0].mxu0 %v1272
          %v1795 = vpop.f32.mrb[0].mxu0
          %v1796 = vadd.f32 %v1587, %v1795
          %v1797 = vpop.f32.mrb[0].mxu0
          %v1798 = vpop.f32.mrb[0].mxu0
          %v1799 = vadd.f32 %v1590, %v1798
          %v1800 = vpop.f32.mrb[0].mxu0
          %1801 = vmatprep.mubr.bf16.mxu0 0
          %1802 = vmatmul.mubr.bf16.gmra.mrb[0].mxu0 %v1273
          %v1803 = vpop.f32.mrb[0].mxu0
          %v1804 = vadd.f32 %v1595, %v1803
          %v1805 = vpop.f32.mrb[0].mxu0
          %v1806 = vpop.f32.mrb[0].mxu0
          %v1807 = vadd.f32 %v1598, %v1806
          %v1808 = vpop.f32.mrb[0].mxu0
          %1809 = vmatprep.mubr.bf16.mxu0 0
          %1810 = vmatmul.mubr.bf16.gmra.mrb[0].mxu0 %v1274
          %v1811 = vpop.f32.mrb[0].mxu0
          %v1812 = vadd.f32 %v1603, %v1811
          %v1813 = vpop.f32.mrb[0].mxu0
          %v1814 = vpop.f32.mrb[0].mxu0
          %v1815 = vadd.f32 %v1606, %v1814
          %v1816 = vpop.f32.mrb[0].mxu0
          %1817 = vmatprep.mubr.bf16.mxu0 0
          %1818 = vmatmul.mubr.bf16.gmra.mrb[0].mxu0 %v1275
          %v1819 = vpop.f32.mrb[0].mxu0
          %v1820 = vadd.f32 %v1611, %v1819
          %v1821 = vpop.f32.mrb[0].mxu0
          %v1822 = vpop.f32.mrb[0].mxu0
          %v1823 = vadd.f32 %v1614, %v1822
          %v1824 = vpop.f32.mrb[0].mxu0
          %1825 = vmatprep.mubr.bf16.mxu0 0
          %1826 = vmatmul.mubr.bf16.gmra.mrb[0].mxu0 %v1276
          %v1827 = vpop.f32.mrb[0].mxu0
          %v1828 = vadd.f32 %v1619, %v1827
          %v1829 = vpop.f32.mrb[0].mxu0
          %v1830 = vpop.f32.mrb[0].mxu0
          %v1831 = vadd.f32 %v1622, %v1830
          %v1832 = vpop.f32.mrb[0].mxu0
          %1833 = vmatprep.mubr.bf16.mxu0 0
          %1834 = vmatmul.mubr.bf16.gmra.mrb[0].mxu0 %v1277
          %v1835 = vpop.f32.mrb[0].mxu0
          %v1836 = vadd.f32 %v1627, %v1835
          %v1837 = vpop.f32.mrb[0].mxu0
          %v1838 = vpop.f32.mrb[0].mxu0
          %v1839 = vadd.f32 %v1630, %v1838
          %v1840 = vpop.f32.mrb[0].mxu0
          %1841 = vmatprep.mubr.bf16.mxu0 0
          %1842 = vmatmul.mubr.bf16.gmra.mrb[0].mxu0 %v1278
          %v1843 = vpop.f32.mrb[0].mxu0
          %v1844 = vadd.f32 %v1635, %v1843
          %v1845 = vpop.f32.mrb[0].mxu0
          %v1846 = vpop.f32.mrb[0].mxu0
          %v1847 = vadd.f32 %v1638, %v1846
          %v1848 = vpop.f32.mrb[0].mxu0
          %1849 = vmatprep.mubr.bf16.mxu0 0
          %1850 = vmatmul.mubr.bf16.gmra.mrb[0].mxu0 %v1279
          %v1851 = vpop.f32.mrb[0].mxu0
          %v1852 = vadd.f32 %v1643, %v1851
          %v1853 = vpop.f32.mrb[0].mxu0
          %v1854 = vpop.f32.mrb[0].mxu0
          %v1855 = vadd.f32 %v1646, %v1854
          %v1856 = vpop.f32.mrb[0].mxu0
          %1857 = vdwg.mxu0
          %v1858 = vld [vmem:[%s6] sm:$0x1]
          %v1860 = vlaneseq
          %v1861 = vshrl.u32 %v1860, 7
          %v1862 = vsub.s32 0, %v1861
          %v1863 = vrot.slane %v1858, %v1862
          %v1865 = vadd.f32 %v1732, %v1863
          %v1866 = vadd.f32 %v1735, %v1863
          %v1867 = vadd.f32 %v1740, %v1863
          %v1868 = vadd.f32 %v1743, %v1863
          %v1869 = vadd.f32 %v1748, %v1863
          %v1870 = vadd.f32 %v1751, %v1863
          %v1871 = vadd.f32 %v1756, %v1863
          %v1872 = vadd.f32 %v1759, %v1863
          %v1873 = vadd.f32 %v1764, %v1863
          %v1874 = vadd.f32 %v1767, %v1863
          %v1875 = vadd.f32 %v1772, %v1863
          %v1876 = vadd.f32 %v1775, %v1863
          %v1877 = vadd.f32 %v1780, %v1863
          %v1878 = vadd.f32 %v1783, %v1863
          %v1879 = vadd.f32 %v1788, %v1863
          %v1880 = vadd.f32 %v1791, %v1863
          %v1881 = vadd.f32 %v1796, %v1863
          %v1882 = vadd.f32 %v1799, %v1863
          %v1883 = vadd.f32 %v1804, %v1863
          %v1884 = vadd.f32 %v1807, %v1863
          %v1885 = vadd.f32 %v1812, %v1863
          %v1886 = vadd.f32 %v1815, %v1863
          %v1887 = vadd.f32 %v1820, %v1863
          %v1888 = vadd.f32 %v1823, %v1863
          %v1889 = vadd.f32 %v1828, %v1863
          %v1890 = vadd.f32 %v1831, %v1863
          %v1891 = vadd.f32 %v1836, %v1863
          %v1892 = vadd.f32 %v1839, %v1863
          %v1893 = vadd.f32 %v1844, %v1863
          %v1894 = vadd.f32 %v1847, %v1863
          %v1895 = vadd.f32 %v1852, %v1863
          %v1896 = vadd.f32 %v1855, %v1863
          %v1897 = vmax.f32 %v1865, 0.0
          %v1898 = vmax.f32 %v1866, 0.0
          %v1899 = vmax.f32 %v1867, 0.0
          %v1900 = vmax.f32 %v1868, 0.0
          %v1901 = vmax.f32 %v1869, 0.0
          %v1902 = vmax.f32 %v1870, 0.0
          %v1903 = vmax.f32 %v1871, 0.0
          %v1904 = vmax.f32 %v1872, 0.0
          %v1905 = vmax.f32 %v1873, 0.0
          %v1906 = vmax.f32 %v1874, 0.0
          %v1907 = vmax.f32 %v1875, 0.0
          %v1908 = vmax.f32 %v1876, 0.0
          %v1909 = vmax.f32 %v1877, 0.0
          %v1910 = vmax.f32 %v1878, 0.0
          %v1911 = vmax.f32 %v1879, 0.0
          %v1912 = vmax.f32 %v1880, 0.0
          %v1913 = vmax.f32 %v1881, 0.0
          %v1914 = vmax.f32 %v1882, 0.0
          %v1915 = vmax.f32 %v1883, 0.0
          %v1916 = vmax.f32 %v1884, 0.0
          %v1917 = vmax.f32 %v1885, 0.0
          %v1918 = vmax.f32 %v1886, 0.0
          %v1919 = vmax.f32 %v1887, 0.0
          %v1920 = vmax.f32 %v1888, 0.0
          %v1921 = vmax.f32 %v1889, 0.0
          %v1922 = vmax.f32 %v1890, 0.0
          %v1923 = vmax.f32 %v1891, 0.0
          %v1924 = vmax.f32 %v1892, 0.0
          %v1925 = vmax.f32 %v1893, 0.0
          %v1926 = vmax.f32 %v1894, 0.0
          %v1927 = vmax.f32 %v1895, 0.0
          %v1928 = vmax.f32 %v1896, 0.0
          %v1929 = vpack.c.bf16 %v1898, %v1897
          %v1930 = vpack.c.bf16 %v1900, %v1899
          %v1931 = vpack.c.bf16 %v1902, %v1901
          %v1932 = vpack.c.bf16 %v1904, %v1903
          %v1933 = vpack.c.bf16 %v1906, %v1905
          %v1934 = vpack.c.bf16 %v1908, %v1907
          %v1935 = vpack.c.bf16 %v1910, %v1909
          %v1936 = vpack.c.bf16 %v1912, %v1911
          %v1937 = vpack.c.bf16 %v1914, %v1913
          %v1938 = vpack.c.bf16 %v1916, %v1915
          %v1939 = vpack.c.bf16 %v1918, %v1917
          %v1940 = vpack.c.bf16 %v1920, %v1919
          %v1941 = vpack.c.bf16 %v1922, %v1921
          %v1942 = vpack.c.bf16 %v1924, %v1923
          %v1943 = vpack.c.bf16 %v1926, %v1925
          %v1944 = vpack.c.bf16 %v1928, %v1927
          %v1945 = vld [vmem:[#allocation9] sm:$0xf]
          %v1946 = vld [vmem:[#allocation9 + $0x4] sm:$0xf]
          %v1947 = vld [vmem:[#allocation9 + $0x8] sm:$0xf]
          %v1948 = vld [vmem:[#allocation9 + $0xc] sm:$0xf]
          %v1949 = vld [vmem:[#allocation9 + $0x10] sm:$0xf]
          %v1950 = vld [vmem:[#allocation9 + $0x14] sm:$0xf]
          %v1951 = vld [vmem:[#allocation9 + $0x18] sm:$0xf]
          %v1952 = vld [vmem:[#allocation9 + $0x1c] sm:$0xf]
          %v1953 = vld [vmem:[#allocation9 + $0x20] sm:$0xf]
          %v1954 = vld [vmem:[#allocation9 + $0x24] sm:$0xf]
          %v1955 = vld [vmem:[#allocation9 + $0x28] sm:$0xf]
          %v1956 = vld [vmem:[#allocation9 + $0x2c] sm:$0xf]
          %v1957 = vld [vmem:[#allocation9 + $0x30] sm:$0xf]
          %v1958 = vld [vmem:[#allocation9 + $0x34] sm:$0xf]
          %v1959 = vld [vmem:[#allocation9 + $0x38] sm:$0xf]
          %v1960 = vld [vmem:[#allocation9 + $0x3c] sm:$0xf]
          %v1977 = vunpack.c.l.b16 %v1945
          %v1978 = vunpack.c.l.b16 %v1946
          %v1979 = vunpack.c.l.b16 %v1947
          %v1980 = vunpack.c.l.b16 %v1948
          %v1981 = vunpack.c.l.b16 %v1949
          %v1982 = vunpack.c.l.b16 %v1950
          %v1983 = vunpack.c.l.b16 %v1951
          %v1984 = vunpack.c.l.b16 %v1952
          %v1985 = vunpack.c.l.b16 %v1953
          %v1986 = vunpack.c.l.b16 %v1954
          %v1987 = vunpack.c.l.b16 %v1955
          %v1988 = vunpack.c.l.b16 %v1956
          %v1989 = vunpack.c.l.b16 %v1957
          %v1990 = vunpack.c.l.b16 %v1958
          %v1991 = vunpack.c.l.b16 %v1959
          %v1992 = vunpack.c.l.b16 %v1960
          %v1993 = vpack.c.b16 %v1978, %v1977
          %v1994 = vpack.c.b16 %v1980, %v1979
          %v1995 = vpack.c.b16 %v1982, %v1981
          %v1996 = vpack.c.b16 %v1984, %v1983
          %v1997 = vpack.c.b16 %v1986, %v1985
          %v1998 = vpack.c.b16 %v1988, %v1987
          %v1999 = vpack.c.b16 %v1990, %v1989
          %v2000 = vpack.c.b16 %v1992, %v1991
          %2009 = vmatprep.subr.bf16.mxu0 0
          %2010 = vmatpush1.bf16.msra.mxu0 %v1993
          %2011 = vmatprep.subr.bf16.mxu0 0
          %2012 = vmatpush1.bf16.msra.mxu0 %v1994
          %2013 = vmatprep.subr.bf16.mxu0 0
          %2014 = vmatpush1.bf16.msra.mxu0 %v1995
          %2015 = vmatprep.subr.bf16.mxu0 0
          %2016 = vmatpush1.bf16.msra.mxu0 %v1996
          %2017 = vmatprep.subr.bf16.mxu0 0
          %2018 = vmatpush1.bf16.msra.mxu0 %v1997
          %2019 = vmatprep.subr.bf16.mxu0 0
          %2020 = vmatpush1.bf16.msra.mxu0 %v1998
          %2021 = vmatprep.subr.bf16.mxu0 0
          %2022 = vmatpush1.bf16.msra.mxu0 %v1999
          %2023 = vmatprep.subr.bf16.mxu0 0
          %2024 = vmatpush1.bf16.msra.mxu0 %v2000
          %2025 = vmatprep.subr.bf16.mxu0 0
          %2026 = vmatpush1.bf16.msra.mxu0 0
          %2027 = vmatprep.subr.bf16.mxu0 0
          %2028 = vmatpush1.bf16.msra.mxu0 0
          %2029 = vmatprep.subr.bf16.mxu0 0
          %2030 = vmatpush1.bf16.msra.mxu0 0
          %2031 = vmatprep.subr.bf16.mxu0 0
          %2032 = vmatpush1.bf16.msra.mxu0 0
          %2033 = vmatprep.subr.bf16.mxu0 0
          %2034 = vmatpush1.bf16.msra.mxu0 0
          %2035 = vmatprep.subr.bf16.mxu0 0
          %2036 = vmatpush1.bf16.msra.mxu0 0
          %2037 = vmatprep.subr.bf16.mxu0 0
          %2038 = vmatpush1.bf16.msra.mxu0 0
          %2039 = vmatprep.subr.bf16.mxu0 0
          %2040 = vmatpush1.bf16.msra.mxu0 0
          %2041 = vmatprep.mubr.bf16.mxu0 0
          %2042 = vmatmul.mubr.bf16.gmra.mrb[0].mxu0 %v1929
          %v2043 = vpop.f32.mrb[0].mxu0
          %v2044 = vadd.f32 0.0, %v2043
          %v2045 = vpop.f32.mrb[0].mxu0
          %v2046 = vpop.f32.mrb[0].mxu0
          %v2047 = vadd.f32 0.0, %v2046
          %v2048 = vpop.f32.mrb[0].mxu0
          %2049 = vmatprep.mubr.bf16.mxu0 0
          %2050 = vmatmul.mubr.bf16.gmra.mrb[0].mxu0 %v1930
          %v2051 = vpop.f32.mrb[0].mxu0
          %v2052 = vadd.f32 0.0, %v2051
          %v2053 = vpop.f32.mrb[0].mxu0
          %v2054 = vpop.f32.mrb[0].mxu0
          %v2055 = vadd.f32 0.0, %v2054
          %v2056 = vpop.f32.mrb[0].mxu0
          %2057 = vmatprep.mubr.bf16.mxu0 0
          %2058 = vmatmul.mubr.bf16.gmra.mrb[0].mxu0 %v1931
          %v2059 = vpop.f32.mrb[0].mxu0
          %v2060 = vadd.f32 0.0, %v2059
          %v2061 = vpop.f32.mrb[0].mxu0
          %v2062 = vpop.f32.mrb[0].mxu0
          %v2063 = vadd.f32 0.0, %v2062
          %v2064 = vpop.f32.mrb[0].mxu0
          %2065 = vmatprep.mubr.bf16.mxu0 0
          %2066 = vmatmul.mubr.bf16.gmra.mrb[0].mxu0 %v1932
          %v2067 = vpop.f32.mrb[0].mxu0
          %v2068 = vadd.f32 0.0, %v2067
          %v2069 = vpop.f32.mrb[0].mxu0
          %v2070 = vpop.f32.mrb[0].mxu0
          %v2071 = vadd.f32 0.0, %v2070
          %v2072 = vpop.f32.mrb[0].mxu0
          %2073 = vmatprep.mubr.bf16.mxu0 0
          %2074 = vmatmul.mubr.bf16.gmra.mrb[0].mxu0 %v1933
          %v2075 = vpop.f32.mrb[0].mxu0
          %v2076 = vadd.f32 0.0, %v2075
          %v2077 = vpop.f32.mrb[0].mxu0
          %v2078 = vpop.f32.mrb[0].mxu0
          %v2079 = vadd.f32 0.0, %v2078
          %v2080 = vpop.f32.mrb[0].mxu0
          %2081 = vmatprep.mubr.bf16.mxu0 0
          %2082 = vmatmul.mubr.bf16.gmra.mrb[0].mxu0 %v1934
          %v2083 = vpop.f32.mrb[0].mxu0
          %v2084 = vadd.f32 0.0, %v2083
          %v2085 = vpop.f32.mrb[0].mxu0
          %v2086 = vpop.f32.mrb[0].mxu0
          %v2087 = vadd.f32 0.0, %v2086
          %v2088 = vpop.f32.mrb[0].mxu0
          %2089 = vmatprep.mubr.bf16.mxu0 0
          %2090 = vmatmul.mubr.bf16.gmra.mrb[0].mxu0 %v1935
          %v2091 = vpop.f32.mrb[0].mxu0
          %v2092 = vadd.f32 0.0, %v2091
          %v2093 = vpop.f32.mrb[0].mxu0
          %v2094 = vpop.f32.mrb[0].mxu0
          %v2095 = vadd.f32 0.0, %v2094
          %v2096 = vpop.f32.mrb[0].mxu0
          %2097 = vmatprep.mubr.bf16.mxu0 0
          %2098 = vmatmul.mubr.bf16.gmra.mrb[0].mxu0 %v1936
          %v2099 = vpop.f32.mrb[0].mxu0
          %v2100 = vadd.f32 0.0, %v2099
          %v2101 = vpop.f32.mrb[0].mxu0
          %v2102 = vpop.f32.mrb[0].mxu0
          %v2103 = vadd.f32 0.0, %v2102
          %v2104 = vpop.f32.mrb[0].mxu0
          %2105 = vmatprep.mubr.bf16.mxu0 0
          %2106 = vmatmul.mubr.bf16.gmra.mrb[0].mxu0 %v1937
          %v2107 = vpop.f32.mrb[0].mxu0
          %v2108 = vadd.f32 0.0, %v2107
          %v2109 = vpop.f32.mrb[0].mxu0
          %v2110 = vpop.f32.mrb[0].mxu0
          %v2111 = vadd.f32 0.0, %v2110
          %v2112 = vpop.f32.mrb[0].mxu0
          %2113 = vmatprep.mubr.bf16.mxu0 0
          %2114 = vmatmul.mubr.bf16.gmra.mrb[0].mxu0 %v1938
          %v2115 = vpop.f32.mrb[0].mxu0
          %v2116 = vadd.f32 0.0, %v2115
          %v2117 = vpop.f32.mrb[0].mxu0
          %v2118 = vpop.f32.mrb[0].mxu0
          %v2119 = vadd.f32 0.0, %v2118
          %v2120 = vpop.f32.mrb[0].mxu0
          %2121 = vmatprep.mubr.bf16.mxu0 0
          %2122 = vmatmul.mubr.bf16.gmra.mrb[0].mxu0 %v1939
          %v2123 = vpop.f32.mrb[0].mxu0
          %v2124 = vadd.f32 0.0, %v2123
          %v2125 = vpop.f32.mrb[0].mxu0
          %v2126 = vpop.f32.mrb[0].mxu0
          %v2127 = vadd.f32 0.0, %v2126
          %v2128 = vpop.f32.mrb[0].mxu0
          %2129 = vmatprep.mubr.bf16.mxu0 0
          %2130 = vmatmul.mubr.bf16.gmra.mrb[0].mxu0 %v1940
          %v2131 = vpop.f32.mrb[0].mxu0
          %v2132 = vadd.f32 0.0, %v2131
          %v2133 = vpop.f32.mrb[0].mxu0
          %v2134 = vpop.f32.mrb[0].mxu0
          %v2135 = vadd.f32 0.0, %v2134
          %v2136 = vpop.f32.mrb[0].mxu0
          %2137 = vmatprep.mubr.bf16.mxu0 0
          %2138 = vmatmul.mubr.bf16.gmra.mrb[0].mxu0 %v1941
          %v2139 = vpop.f32.mrb[0].mxu0
          %v2140 = vadd.f32 0.0, %v2139
          %v2141 = vpop.f32.mrb[0].mxu0
          %v2142 = vpop.f32.mrb[0].mxu0
          %v2143 = vadd.f32 0.0, %v2142
          %v2144 = vpop.f32.mrb[0].mxu0
          %2145 = vmatprep.mubr.bf16.mxu0 0
          %2146 = vmatmul.mubr.bf16.gmra.mrb[0].mxu0 %v1942
          %v2147 = vpop.f32.mrb[0].mxu0
          %v2148 = vadd.f32 0.0, %v2147
          %v2149 = vpop.f32.mrb[0].mxu0
          %v2150 = vpop.f32.mrb[0].mxu0
          %v2151 = vadd.f32 0.0, %v2150
          %v2152 = vpop.f32.mrb[0].mxu0
          %2153 = vmatprep.mubr.bf16.mxu0 0
          %2154 = vmatmul.mubr.bf16.gmra.mrb[0].mxu0 %v1943
          %v2155 = vpop.f32.mrb[0].mxu0
          %v2156 = vadd.f32 0.0, %v2155
          %v2157 = vpop.f32.mrb[0].mxu0
          %v2158 = vpop.f32.mrb[0].mxu0
          %v2159 = vadd.f32 0.0, %v2158
          %v2160 = vpop.f32.mrb[0].mxu0
          %2161 = vmatprep.mubr.bf16.mxu0 0
          %2162 = vmatmul.mubr.bf16.gmra.mrb[0].mxu0 %v1944
          %v2163 = vpop.f32.mrb[0].mxu0
          %v2164 = vadd.f32 0.0, %v2163
          %v2165 = vpop.f32.mrb[0].mxu0
          %v2166 = vpop.f32.mrb[0].mxu0
          %v2167 = vadd.f32 0.0, %v2166
          %v2168 = vpop.f32.mrb[0].mxu0
          %2169 = vdwg.mxu0
          %v2170 = vpack.c.bf16 %v2047, %v2044
          %v2171 = vpack.c.bf16 %v2055, %v2052
          %v2172 = vpack.c.bf16 %v2063, %v2060
          %v2173 = vpack.c.bf16 %v2071, %v2068
          %v2174 = vpack.c.bf16 %v2079, %v2076
          %v2175 = vpack.c.bf16 %v2087, %v2084
          %v2176 = vpack.c.bf16 %v2095, %v2092
          %v2177 = vpack.c.bf16 %v2103, %v2100
          %v2178 = vpack.c.bf16 %v2111, %v2108
          %v2179 = vpack.c.bf16 %v2119, %v2116
          %v2180 = vpack.c.bf16 %v2127, %v2124
          %v2181 = vpack.c.bf16 %v2135, %v2132
          %v2182 = vpack.c.bf16 %v2143, %v2140
          %v2183 = vpack.c.bf16 %v2151, %v2148
          %v2184 = vpack.c.bf16 %v2159, %v2156
          %v2185 = vpack.c.bf16 %v2167, %v2164
          %v2202 = vunpack.c.l.b16 %v2170
          %v2203 = vunpack.c.h.b16 %v2170
          %v2204 = vunpack.c.l.b16 %v2171
          %v2205 = vunpack.c.h.b16 %v2171
          %v2206 = vunpack.c.l.b16 %v2172
          %v2207 = vunpack.c.h.b16 %v2172
          %v2208 = vunpack.c.l.b16 %v2173
          %v2209 = vunpack.c.h.b16 %v2173
          %v2210 = vunpack.c.l.b16 %v2174
          %v2211 = vunpack.c.h.b16 %v2174
          %v2212 = vunpack.c.l.b16 %v2175
          %v2213 = vunpack.c.h.b16 %v2175
          %v2214 = vunpack.c.l.b16 %v2176
          %v2215 = vunpack.c.h.b16 %v2176
          %v2216 = vunpack.c.l.b16 %v2177
          %v2217 = vunpack.c.h.b16 %v2177
          %v2218 = vunpack.c.l.b16 %v2178
          %v2219 = vunpack.c.h.b16 %v2178
          %v2220 = vunpack.c.l.b16 %v2179
          %v2221 = vunpack.c.h.b16 %v2179
          %v2222 = vunpack.c.l.b16 %v2180
          %v2223 = vunpack.c.h.b16 %v2180
          %v2224 = vunpack.c.l.b16 %v2181
          %v2225 = vunpack.c.h.b16 %v2181
          %v2226 = vunpack.c.l.b16 %v2182
          %v2227 = vunpack.c.h.b16 %v2182
          %v2228 = vunpack.c.l.b16 %v2183
          %v2229 = vunpack.c.h.b16 %v2183
          %v2230 = vunpack.c.l.b16 %v2184
          %v2231 = vunpack.c.h.b16 %v2184
          %v2232 = vunpack.c.l.b16 %v2185
          %v2233 = vunpack.c.h.b16 %v2185
          %v2234 = vpack.c.b16 %v2202, %v2202
          %v2235 = vpack.c.b16 %v2203, %v2203
          %v2236 = vpack.c.b16 %v2204, %v2204
          %v2237 = vpack.c.b16 %v2205, %v2205
          %v2238 = vpack.c.b16 %v2206, %v2206
          %v2239 = vpack.c.b16 %v2207, %v2207
          %v2240 = vpack.c.b16 %v2208, %v2208
          %v2241 = vpack.c.b16 %v2209, %v2209
          %v2242 = vpack.c.b16 %v2210, %v2210
          %v2243 = vpack.c.b16 %v2211, %v2211
          %v2244 = vpack.c.b16 %v2212, %v2212
          %v2245 = vpack.c.b16 %v2213, %v2213
          %v2246 = vpack.c.b16 %v2214, %v2214
          %v2247 = vpack.c.b16 %v2215, %v2215
          %v2248 = vpack.c.b16 %v2216, %v2216
          %v2249 = vpack.c.b16 %v2217, %v2217
          %v2250 = vpack.c.b16 %v2218, %v2218
          %v2251 = vpack.c.b16 %v2219, %v2219
          %v2252 = vpack.c.b16 %v2220, %v2220
          %v2253 = vpack.c.b16 %v2221, %v2221
          %v2254 = vpack.c.b16 %v2222, %v2222
          %v2255 = vpack.c.b16 %v2223, %v2223
          %v2256 = vpack.c.b16 %v2224, %v2224
          %v2257 = vpack.c.b16 %v2225, %v2225
          %v2258 = vpack.c.b16 %v2226, %v2226
          %v2259 = vpack.c.b16 %v2227, %v2227
          %v2260 = vpack.c.b16 %v2228, %v2228
          %v2261 = vpack.c.b16 %v2229, %v2229
          %v2262 = vpack.c.b16 %v2230, %v2230
          %v2263 = vpack.c.b16 %v2231, %v2231
          %v2264 = vpack.c.b16 %v2232, %v2232
          %v2265 = vpack.c.b16 %v2233, %v2233
          %2298 = vst [vmem:[%s504] sm:$0xf] %v2234
          %2299 = vst [vmem:[%s504 + $0x4] sm:$0xf] %v2235
          %2300 = vst [vmem:[%s504 + $0x8] sm:$0xf] %v2236
          %2301 = vst [vmem:[%s504 + $0xc] sm:$0xf] %v2237
          %2302 = vst [vmem:[%s504 + $0x10] sm:$0xf] %v2238
          %2303 = vst [vmem:[%s504 + $0x14] sm:$0xf] %v2239
          %2304 = vst [vmem:[%s504 + $0x18] sm:$0xf] %v2240
          %2305 = vst [vmem:[%s504 + $0x1c] sm:$0xf] %v2241
          %2306 = vst [vmem:[%s504 + $0x20] sm:$0xf] %v2242
          %2307 = vst [vmem:[%s504 + $0x24] sm:$0xf] %v2243
          %2308 = vst [vmem:[%s504 + $0x28] sm:$0xf] %v2244
          %2309 = vst [vmem:[%s504 + $0x2c] sm:$0xf] %v2245
          %2310 = vst [vmem:[%s504 + $0x30] sm:$0xf] %v2246
          %2311 = vst [vmem:[%s504 + $0x34] sm:$0xf] %v2247
          %2312 = vst [vmem:[%s504 + $0x38] sm:$0xf] %v2248
          %2313 = vst [vmem:[%s504 + $0x3c] sm:$0xf] %v2249
          %2314 = vst [vmem:[%s504 + $0x40] sm:$0xf] %v2250
          %2315 = vst [vmem:[%s504 + $0x44] sm:$0xf] %v2251
          %2316 = vst [vmem:[%s504 + $0x48] sm:$0xf] %v2252
          %2317 = vst [vmem:[%s504 + $0x4c] sm:$0xf] %v2253
          %2318 = vst [vmem:[%s504 + $0x50] sm:$0xf] %v2254
          %2319 = vst [vmem:[%s504 + $0x54] sm:$0xf] %v2255
          %2320 = vst [vmem:[%s504 + $0x58] sm:$0xf] %v2256
          %2321 = vst [vmem:[%s504 + $0x5c] sm:$0xf] %v2257
          %2322 = vst [vmem:[%s504 + $0x60] sm:$0xf] %v2258
          %2323 = vst [vmem:[%s504 + $0x64] sm:$0xf] %v2259
          %2324 = vst [vmem:[%s504 + $0x68] sm:$0xf] %v2260
          %2325 = vst [vmem:[%s504 + $0x6c] sm:$0xf] %v2261
          %2326 = vst [vmem:[%s504 + $0x70] sm:$0xf] %v2262
          %2327 = vst [vmem:[%s504 + $0x74] sm:$0xf] %v2263
          %2328 = vst [vmem:[%s504 + $0x78] sm:$0xf] %v2264
          %2329 = vst [vmem:[%s504 + $0x7c] sm:$0xf] %v2265
          %v2330 = vld [vmem:[#allocation11] sm:$0xf]
          %v2331 = vld [vmem:[#allocation11 + $0x4] sm:$0xf]
          %v2332 = vld [vmem:[#allocation11 + $0x8] sm:$0xf]
          %v2333 = vld [vmem:[#allocation11 + $0xc] sm:$0xf]
          %v2334 = vld [vmem:[#allocation11 + $0x10] sm:$0xf]
          %v2335 = vld [vmem:[#allocation11 + $0x14] sm:$0xf]
          %v2336 = vld [vmem:[#allocation11 + $0x18] sm:$0xf]
          %v2337 = vld [vmem:[#allocation11 + $0x1c] sm:$0xf]
          %v2338 = vld [vmem:[#allocation11 + $0x20] sm:$0xf]
          %v2339 = vld [vmem:[#allocation11 + $0x24] sm:$0xf]
          %v2340 = vld [vmem:[#allocation11 + $0x28] sm:$0xf]
          %v2341 = vld [vmem:[#allocation11 + $0x2c] sm:$0xf]
          %v2342 = vld [vmem:[#allocation11 + $0x30] sm:$0xf]
          %v2343 = vld [vmem:[#allocation11 + $0x34] sm:$0xf]
          %v2344 = vld [vmem:[#allocation11 + $0x38] sm:$0xf]
          %v2345 = vld [vmem:[#allocation11 + $0x3c] sm:$0xf]
          %v2362 = vunpack.c.l.b16 %v2330
          %v2363 = vunpack.c.l.b16 %v2331
          %v2364 = vunpack.c.l.b16 %v2332
          %v2365 = vunpack.c.l.b16 %v2333
          %v2366 = vunpack.c.l.b16 %v2334
          %v2367 = vunpack.c.l.b16 %v2335
          %v2368 = vunpack.c.l.b16 %v2336
          %v2369 = vunpack.c.l.b16 %v2337
          %v2370 = vunpack.c.l.b16 %v2338
          %v2371 = vunpack.c.l.b16 %v2339
          %v2372 = vunpack.c.l.b16 %v2340
          %v2373 = vunpack.c.l.b16 %v2341
          %v2374 = vunpack.c.l.b16 %v2342
          %v2375 = vunpack.c.l.b16 %v2343
          %v2376 = vunpack.c.l.b16 %v2344
          %v2377 = vunpack.c.l.b16 %v2345
          %v2378 = vpack.c.b16 %v2363, %v2362
          %v2379 = vpack.c.b16 %v2365, %v2364
          %v2380 = vpack.c.b16 %v2367, %v2366
          %v2381 = vpack.c.b16 %v2369, %v2368
          %v2382 = vpack.c.b16 %v2371, %v2370
          %v2383 = vpack.c.b16 %v2373, %v2372
          %v2384 = vpack.c.b16 %v2375, %v2374
          %v2385 = vpack.c.b16 %v2377, %v2376
          %2394 = vmatprep.subr.bf16.mxu0 0
          %2395 = vmatpush1.bf16.msra.mxu0 %v2378
          %2396 = vmatprep.subr.bf16.mxu0 0
          %2397 = vmatpush1.bf16.msra.mxu0 %v2379
          %2398 = vmatprep.subr.bf16.mxu0 0
          %2399 = vmatpush1.bf16.msra.mxu0 %v2380
          %2400 = vmatprep.subr.bf16.mxu0 0
          %2401 = vmatpush1.bf16.msra.mxu0 %v2381
          %2402 = vmatprep.subr.bf16.mxu0 0
          %2403 = vmatpush1.bf16.msra.mxu0 %v2382
          %2404 = vmatprep.subr.bf16.mxu0 0
          %2405 = vmatpush1.bf16.msra.mxu0 %v2383
          %2406 = vmatprep.subr.bf16.mxu0 0
          %2407 = vmatpush1.bf16.msra.mxu0 %v2384
          %2408 = vmatprep.subr.bf16.mxu0 0
          %2409 = vmatpush1.bf16.msra.mxu0 %v2385
          %2410 = vmatprep.subr.bf16.mxu0 0
          %2411 = vmatpush1.bf16.msra.mxu0 0
          %2412 = vmatprep.subr.bf16.mxu0 0
          %2413 = vmatpush1.bf16.msra.mxu0 0
          %2414 = vmatprep.subr.bf16.mxu0 0
          %2415 = vmatpush1.bf16.msra.mxu0 0
          %2416 = vmatprep.subr.bf16.mxu0 0
          %2417 = vmatpush1.bf16.msra.mxu0 0
          %2418 = vmatprep.subr.bf16.mxu0 0
          %2419 = vmatpush1.bf16.msra.mxu0 0
          %2420 = vmatprep.subr.bf16.mxu0 0
          %2421 = vmatpush1.bf16.msra.mxu0 0
          %2422 = vmatprep.subr.bf16.mxu0 0
          %2423 = vmatpush1.bf16.msra.mxu0 0
          %2424 = vmatprep.subr.bf16.mxu0 0
          %2425 = vmatpush1.bf16.msra.mxu0 0
          %2426 = vmatprep.mubr.bf16.mxu0 0
          %2427 = vmatmul.mubr.bf16.gmra.mrb[0].mxu0 %v1929
          %v2428 = vpop.f32.mrb[0].mxu0
          %v2429 = vadd.f32 0.0, %v2428
          %v2430 = vpop.f32.mrb[0].mxu0
          %v2431 = vpop.f32.mrb[0].mxu0
          %v2432 = vadd.f32 0.0, %v2431
          %v2433 = vpop.f32.mrb[0].mxu0
          %2434 = vmatprep.mubr.bf16.mxu0 0
          %2435 = vmatmul.mubr.bf16.gmra.mrb[0].mxu0 %v1930
          %v2436 = vpop.f32.mrb[0].mxu0
          %v2437 = vadd.f32 0.0, %v2436
          %v2438 = vpop.f32.mrb[0].mxu0
          %v2439 = vpop.f32.mrb[0].mxu0
          %v2440 = vadd.f32 0.0, %v2439
          %v2441 = vpop.f32.mrb[0].mxu0
          %2442 = vmatprep.mubr.bf16.mxu0 0
          %2443 = vmatmul.mubr.bf16.gmra.mrb[0].mxu0 %v1931
          %v2444 = vpop.f32.mrb[0].mxu0
          %v2445 = vadd.f32 0.0, %v2444
          %v2446 = vpop.f32.mrb[0].mxu0
          %v2447 = vpop.f32.mrb[0].mxu0
          %v2448 = vadd.f32 0.0, %v2447
          %v2449 = vpop.f32.mrb[0].mxu0
          %2450 = vmatprep.mubr.bf16.mxu0 0
          %2451 = vmatmul.mubr.bf16.gmra.mrb[0].mxu0 %v1932
          %v2452 = vpop.f32.mrb[0].mxu0
          %v2453 = vadd.f32 0.0, %v2452
          %v2454 = vpop.f32.mrb[0].mxu0
          %v2455 = vpop.f32.mrb[0].mxu0
          %v2456 = vadd.f32 0.0, %v2455
          %v2457 = vpop.f32.mrb[0].mxu0
          %2458 = vmatprep.mubr.bf16.mxu0 0
          %2459 = vmatmul.mubr.bf16.gmra.mrb[0].mxu0 %v1933
          %v2460 = vpop.f32.mrb[0].mxu0
          %v2461 = vadd.f32 0.0, %v2460
          %v2462 = vpop.f32.mrb[0].mxu0
          %v2463 = vpop.f32.mrb[0].mxu0
          %v2464 = vadd.f32 0.0, %v2463
          %v2465 = vpop.f32.mrb[0].mxu0
          %2466 = vmatprep.mubr.bf16.mxu0 0
          %2467 = vmatmul.mubr.bf16.gmra.mrb[0].mxu0 %v1934
          %v2468 = vpop.f32.mrb[0].mxu0
          %v2469 = vadd.f32 0.0, %v2468
          %v2470 = vpop.f32.mrb[0].mxu0
          %v2471 = vpop.f32.mrb[0].mxu0
          %v2472 = vadd.f32 0.0, %v2471
          %v2473 = vpop.f32.mrb[0].mxu0
          %2474 = vmatprep.mubr.bf16.mxu0 0
          %2475 = vmatmul.mubr.bf16.gmra.mrb[0].mxu0 %v1935
          %v2476 = vpop.f32.mrb[0].mxu0
          %v2477 = vadd.f32 0.0, %v2476
          %v2478 = vpop.f32.mrb[0].mxu0
          %v2479 = vpop.f32.mrb[0].mxu0
          %v2480 = vadd.f32 0.0, %v2479
          %v2481 = vpop.f32.mrb[0].mxu0
          %2482 = vmatprep.mubr.bf16.mxu0 0
          %2483 = vmatmul.mubr.bf16.gmra.mrb[0].mxu0 %v1936
          %v2484 = vpop.f32.mrb[0].mxu0
          %v2485 = vadd.f32 0.0, %v2484
          %v2486 = vpop.f32.mrb[0].mxu0
          %v2487 = vpop.f32.mrb[0].mxu0
          %v2488 = vadd.f32 0.0, %v2487
          %v2489 = vpop.f32.mrb[0].mxu0
          %2490 = vmatprep.mubr.bf16.mxu0 0
          %2491 = vmatmul.mubr.bf16.gmra.mrb[0].mxu0 %v1937
          %v2492 = vpop.f32.mrb[0].mxu0
          %v2493 = vadd.f32 0.0, %v2492
          %v2494 = vpop.f32.mrb[0].mxu0
          %v2495 = vpop.f32.mrb[0].mxu0
          %v2496 = vadd.f32 0.0, %v2495
          %v2497 = vpop.f32.mrb[0].mxu0
          %2498 = vmatprep.mubr.bf16.mxu0 0
          %2499 = vmatmul.mubr.bf16.gmra.mrb[0].mxu0 %v1938
          %v2500 = vpop.f32.mrb[0].mxu0
          %v2501 = vadd.f32 0.0, %v2500
          %v2502 = vpop.f32.mrb[0].mxu0
          %v2503 = vpop.f32.mrb[0].mxu0
          %v2504 = vadd.f32 0.0, %v2503
          %v2505 = vpop.f32.mrb[0].mxu0
          %2506 = vmatprep.mubr.bf16.mxu0 0
          %2507 = vmatmul.mubr.bf16.gmra.mrb[0].mxu0 %v1939
          %v2508 = vpop.f32.mrb[0].mxu0
          %v2509 = vadd.f32 0.0, %v2508
          %v2510 = vpop.f32.mrb[0].mxu0
          %v2511 = vpop.f32.mrb[0].mxu0
          %v2512 = vadd.f32 0.0, %v2511
          %v2513 = vpop.f32.mrb[0].mxu0
          %2514 = vmatprep.mubr.bf16.mxu0 0
          %2515 = vmatmul.mubr.bf16.gmra.mrb[0].mxu0 %v1940
          %v2516 = vpop.f32.mrb[0].mxu0
          %v2517 = vadd.f32 0.0, %v2516
          %v2518 = vpop.f32.mrb[0].mxu0
          %v2519 = vpop.f32.mrb[0].mxu0
          %v2520 = vadd.f32 0.0, %v2519
          %v2521 = vpop.f32.mrb[0].mxu0
          %2522 = vmatprep.mubr.bf16.mxu0 0
          %2523 = vmatmul.mubr.bf16.gmra.mrb[0].mxu0 %v1941
          %v2524 = vpop.f32.mrb[0].mxu0
          %v2525 = vadd.f32 0.0, %v2524
          %v2526 = vpop.f32.mrb[0].mxu0
          %v2527 = vpop.f32.mrb[0].mxu0
          %v2528 = vadd.f32 0.0, %v2527
          %v2529 = vpop.f32.mrb[0].mxu0
          %2530 = vmatprep.mubr.bf16.mxu0 0
          %2531 = vmatmul.mubr.bf16.gmra.mrb[0].mxu0 %v1942
          %v2532 = vpop.f32.mrb[0].mxu0
          %v2533 = vadd.f32 0.0, %v2532
          %v2534 = vpop.f32.mrb[0].mxu0
          %v2535 = vpop.f32.mrb[0].mxu0
          %v2536 = vadd.f32 0.0, %v2535
          %v2537 = vpop.f32.mrb[0].mxu0
          %2538 = vmatprep.mubr.bf16.mxu0 0
          %2539 = vmatmul.mubr.bf16.gmra.mrb[0].mxu0 %v1943
          %v2540 = vpop.f32.mrb[0].mxu0
          %v2541 = vadd.f32 0.0, %v2540
          %v2542 = vpop.f32.mrb[0].mxu0
          %v2543 = vpop.f32.mrb[0].mxu0
          %v2544 = vadd.f32 0.0, %v2543
          %v2545 = vpop.f32.mrb[0].mxu0
          %2546 = vmatprep.mubr.bf16.mxu0 0
          %2547 = vmatmul.mubr.bf16.gmra.mrb[0].mxu0 %v1944
          %v2548 = vpop.f32.mrb[0].mxu0
          %v2549 = vadd.f32 0.0, %v2548
          %v2550 = vpop.f32.mrb[0].mxu0
          %v2551 = vpop.f32.mrb[0].mxu0
          %v2552 = vadd.f32 0.0, %v2551
          %v2553 = vpop.f32.mrb[0].mxu0
          %2554 = vdwg.mxu0
          %v2555 = vpack.c.bf16 %v2432, %v2429
          %v2556 = vpack.c.bf16 %v2440, %v2437
          %v2557 = vpack.c.bf16 %v2448, %v2445
          %v2558 = vpack.c.bf16 %v2456, %v2453
          %v2559 = vpack.c.bf16 %v2464, %v2461
          %v2560 = vpack.c.bf16 %v2472, %v2469
          %v2561 = vpack.c.bf16 %v2480, %v2477
          %v2562 = vpack.c.bf16 %v2488, %v2485
          %v2563 = vpack.c.bf16 %v2496, %v2493
          %v2564 = vpack.c.bf16 %v2504, %v2501
          %v2565 = vpack.c.bf16 %v2512, %v2509
          %v2566 = vpack.c.bf16 %v2520, %v2517
          %v2567 = vpack.c.bf16 %v2528, %v2525
          %v2568 = vpack.c.bf16 %v2536, %v2533
          %v2569 = vpack.c.bf16 %v2544, %v2541
          %v2570 = vpack.c.bf16 %v2552, %v2549
          %v2587 = vunpack.c.l.b16 %v2555
          %v2588 = vunpack.c.h.b16 %v2555
          %v2589 = vunpack.c.l.b16 %v2556
          %v2590 = vunpack.c.h.b16 %v2556
          %v2591 = vunpack.c.l.b16 %v2557
          %v2592 = vunpack.c.h.b16 %v2557
          %v2593 = vunpack.c.l.b16 %v2558
          %v2594 = vunpack.c.h.b16 %v2558
          %v2595 = vunpack.c.l.b16 %v2559
          %v2596 = vunpack.c.h.b16 %v2559
          %v2597 = vunpack.c.l.b16 %v2560
          %v2598 = vunpack.c.h.b16 %v2560
          %v2599 = vunpack.c.l.b16 %v2561
          %v2600 = vunpack.c.h.b16 %v2561
          %v2601 = vunpack.c.l.b16 %v2562
          %v2602 = vunpack.c.h.b16 %v2562
          %v2603 = vunpack.c.l.b16 %v2563
          %v2604 = vunpack.c.h.b16 %v2563
          %v2605 = vunpack.c.l.b16 %v2564
          %v2606 = vunpack.c.h.b16 %v2564
          %v2607 = vunpack.c.l.b16 %v2565
          %v2608 = vunpack.c.h.b16 %v2565
          %v2609 = vunpack.c.l.b16 %v2566
          %v2610 = vunpack.c.h.b16 %v2566
          %v2611 = vunpack.c.l.b16 %v2567
          %v2612 = vunpack.c.h.b16 %v2567
          %v2613 = vunpack.c.l.b16 %v2568
          %v2614 = vunpack.c.h.b16 %v2568
          %v2615 = vunpack.c.l.b16 %v2569
          %v2616 = vunpack.c.h.b16 %v2569
          %v2617 = vunpack.c.l.b16 %v2570
          %v2618 = vunpack.c.h.b16 %v2570
          %v2619 = vpack.c.b16 %v2587, %v2587
          %v2620 = vpack.c.b16 %v2588, %v2588
          %v2621 = vpack.c.b16 %v2589, %v2589
          %v2622 = vpack.c.b16 %v2590, %v2590
          %v2623 = vpack.c.b16 %v2591, %v2591
          %v2624 = vpack.c.b16 %v2592, %v2592
          %v2625 = vpack.c.b16 %v2593, %v2593
          %v2626 = vpack.c.b16 %v2594, %v2594
          %v2627 = vpack.c.b16 %v2595, %v2595
          %v2628 = vpack.c.b16 %v2596, %v2596
          %v2629 = vpack.c.b16 %v2597, %v2597
          %v2630 = vpack.c.b16 %v2598, %v2598
          %v2631 = vpack.c.b16 %v2599, %v2599
          %v2632 = vpack.c.b16 %v2600, %v2600
          %v2633 = vpack.c.b16 %v2601, %v2601
          %v2634 = vpack.c.b16 %v2602, %v2602
          %v2635 = vpack.c.b16 %v2603, %v2603
          %v2636 = vpack.c.b16 %v2604, %v2604
          %v2637 = vpack.c.b16 %v2605, %v2605
          %v2638 = vpack.c.b16 %v2606, %v2606
          %v2639 = vpack.c.b16 %v2607, %v2607
          %v2640 = vpack.c.b16 %v2608, %v2608
          %v2641 = vpack.c.b16 %v2609, %v2609
          %v2642 = vpack.c.b16 %v2610, %v2610
          %v2643 = vpack.c.b16 %v2611, %v2611
          %v2644 = vpack.c.b16 %v2612, %v2612
          %v2645 = vpack.c.b16 %v2613, %v2613
          %v2646 = vpack.c.b16 %v2614, %v2614
          %v2647 = vpack.c.b16 %v2615, %v2615
          %v2648 = vpack.c.b16 %v2616, %v2616
          %v2649 = vpack.c.b16 %v2617, %v2617
          %v2650 = vpack.c.b16 %v2618, %v2618
          %2683 = vst [vmem:[%s511] sm:$0xf] %v2619
          %2684 = vst [vmem:[%s511 + $0x4] sm:$0xf] %v2620
          %2685 = vst [vmem:[%s511 + $0x8] sm:$0xf] %v2621
          %2686 = vst [vmem:[%s511 + $0xc] sm:$0xf] %v2622
          %2687 = vst [vmem:[%s511 + $0x10] sm:$0xf] %v2623
          %2688 = vst [vmem:[%s511 + $0x14] sm:$0xf] %v2624
          %2689 = vst [vmem:[%s511 + $0x18] sm:$0xf] %v2625
          %2690 = vst [vmem:[%s511 + $0x1c] sm:$0xf] %v2626
          %2691 = vst [vmem:[%s511 + $0x20] sm:$0xf] %v2627
          %2692 = vst [vmem:[%s511 + $0x24] sm:$0xf] %v2628
          %2693 = vst [vmem:[%s511 + $0x28] sm:$0xf] %v2629
          %2694 = vst [vmem:[%s511 + $0x2c] sm:$0xf] %v2630
          %2695 = vst [vmem:[%s511 + $0x30] sm:$0xf] %v2631
          %2696 = vst [vmem:[%s511 + $0x34] sm:$0xf] %v2632
          %2697 = vst [vmem:[%s511 + $0x38] sm:$0xf] %v2633
          %2698 = vst [vmem:[%s511 + $0x3c] sm:$0xf] %v2634
          %2699 = vst [vmem:[%s511 + $0x40] sm:$0xf] %v2635
          %2700 = vst [vmem:[%s511 + $0x44] sm:$0xf] %v2636
          %2701 = vst [vmem:[%s511 + $0x48] sm:$0xf] %v2637
          %2702 = vst [vmem:[%s511 + $0x4c] sm:$0xf] %v2638
          %2703 = vst [vmem:[%s511 + $0x50] sm:$0xf] %v2639
          %2704 = vst [vmem:[%s511 + $0x54] sm:$0xf] %v2640
          %2705 = vst [vmem:[%s511 + $0x58] sm:$0xf] %v2641
          %2706 = vst [vmem:[%s511 + $0x5c] sm:$0xf] %v2642
          %2707 = vst [vmem:[%s511 + $0x60] sm:$0xf] %v2643
          %2708 = vst [vmem:[%s511 + $0x64] sm:$0xf] %v2644
          %2709 = vst [vmem:[%s511 + $0x68] sm:$0xf] %v2645
          %2710 = vst [vmem:[%s511 + $0x6c] sm:$0xf] %v2646
          %2711 = vst [vmem:[%s511 + $0x70] sm:$0xf] %v2647
          %2712 = vst [vmem:[%s511 + $0x74] sm:$0xf] %v2648
          %2713 = vst [vmem:[%s511 + $0x78] sm:$0xf] %v2649
          %2714 = vst [vmem:[%s511 + $0x7c] sm:$0xf] %v2650
        $region84: #{tpu_custom_call.1} parent=55 // pred_fallthru
          _
        %s2715 = sand.u32 %s264, 1
        %s2716 = scalar_lea.sflag [#allocation5], %s2715
        %s2717 = sand.u32 %s264, 1
        %s2718 = smul.addr %s2717, 128
        %s2719 = scalar_lea.vmem [#allocation12], %s2718
        %s2720 = sand.u32 %s290, 1
        %s2721 = scalar_lea.sflag [#allocation14], %s2720
        %s2722 = sand.u32 %s290, 1
        %s2723 = smul.addr %s2722, 128
        %s2724 = scalar_lea.vmem [#allocation13], %s2723
        // Predicated region
        $region85: #{tpu_custom_call.1} parent=55 // pred_check
          %p2725 = pneg %p274
        $region86: #{tpu_custom_call.1} parent=55 // pred_check_branch
          %2727 = sbr.rel (%p2725) target = $region88
        $region87: #{tpu_custom_call.1} parent=55 // pred_region
          %s2728 = smul.u32 32, %s37
          %s2730 = ssub.s32 2048, 2048
          %2731 = vsyncadd %s2716, %s2730
          %s2732 = smul.addr %s2728, 64
          %s2733 = scalar_lea.hbm %s9, %s2732
          %s2734 = sshll.u32 %s2719, 4
          %s2735 = int_to_ptr.vmem [resolvable:$true] %s2734
          %2740 = dma.vmem_to_hbm [thread:$0]  %s2735, 2048, %s2733, %s2716, 64, 64, 4
        $region88: #{tpu_custom_call.1} parent=55 // pred_fallthru
          _
        // Predicated region
        $region89: #{tpu_custom_call.1} parent=55 // pred_check
          %p2741 = pneg %p300
        $region90: #{tpu_custom_call.1} parent=55 // pred_check_branch
          %2743 = sbr.rel (%p2741) target = $region92
        $region91: #{tpu_custom_call.1} parent=55 // pred_region
          %s2744 = smul.u32 32, %s37
          %s2746 = ssub.s32 2048, 2048
          %2747 = vsyncadd %s2721, %s2746
          %s2748 = smul.addr %s2744, 64
          %s2749 = scalar_lea.hbm %s10, %s2748
          %s2750 = sshll.u32 %s2724, 4
          %s2751 = int_to_ptr.vmem [resolvable:$true] %s2750
          %2756 = dma.vmem_to_hbm [thread:$0]  %s2751, 2048, %s2749, %s2721, 64, 64, 4
        $region92: #{tpu_custom_call.1} parent=55 // pred_fallthru
          _
      $region56: #{tpu_custom_call.1} parent=5 // pred_fallthru
        _
      %p2757 = scmp.le.s32.totalorder 2, %s28
      // Predicated region
      $region93: #{tpu_custom_call.1} parent=5 // pred_check
        %p2758 = pneg %p2757
      $region94: #{tpu_custom_call.1} parent=5 // pred_check_branch
        %2760 = sbr.rel (%p2758) target = $region96
      $region95: #{tpu_custom_call.1} parent=5 // pred_region
        %s2761 = ssub.s32 %s28, 2
        // Predicated region
        $region97: #{tpu_custom_call.1} parent=95 // pred_check
          %p2762 = pneg %p280
        $region98: #{tpu_custom_call.1} parent=95 // pred_check_branch
          %2764 = sbr.rel (%p2762) target = $region100
        $region99: #{tpu_custom_call.1} parent=95 // pred_region
          %s2765 = sand.u32 %s265, 1
          %s2766 = scalar_lea.sflag [#allocation5], %s2765
          %s2767 = sand.u32 %s265, 1
          %s2768 = smul.addr %s2767, 128
          %s2769 = scalar_lea.vmem [#allocation12], %s2768
          %2770 = dma.done %s2766, 2048
        $region100: #{tpu_custom_call.1} parent=95 // pred_fallthru
          _
        // Predicated region
        $region101: #{tpu_custom_call.1} parent=95 // pred_check
          %p2771 = pneg %p306
        $region102: #{tpu_custom_call.1} parent=95 // pred_check_branch
          %2773 = sbr.rel (%p2771) target = $region104
        $region103: #{tpu_custom_call.1} parent=95 // pred_region
          %s2774 = sand.u32 %s291, 1
          %s2775 = scalar_lea.sflag [#allocation14], %s2774
          %s2776 = sand.u32 %s291, 1
          %s2777 = smul.addr %s2776, 128
          %s2778 = scalar_lea.vmem [#allocation13], %s2777
          %2779 = dma.done %s2775, 2048
        $region104: #{tpu_custom_call.1} parent=95 // pred_fallthru
          _
      $region96: #{tpu_custom_call.1} parent=5 // pred_fallthru
        _
    $region6: #{tpu_custom_call.1} parent=1 // loop_footer
      %s32 = sadd.s32 1, %s28
    $region7: #{tpu_custom_call.1} parent=1 // loop_footer_branch
      %27 = sbr.rel target = $region3
    $region8: #{tpu_custom_call.1} parent=1 // loop_exit
      _
    %2780 = vsyncpa [#allocation4], 1
    %s2781 = scalar_lea.sflag [#allocation4], 1
    %2782 = vsyncpa %s2781, 1
    %2783 = vsyncpa [#allocation7], 1
    %2784 = vsyncpa [#allocation10], 1
    %2785 = vsyncpa [#allocation5], 1
    %s2786 = scalar_lea.sflag [#allocation5], 1
    %2787 = vsyncpa %s2786, 1
    %2788 = vsyncpa [#allocation14], 1
    %s2789 = scalar_lea.sflag [#allocation14], 1
    %2790 = vsyncpa %s2789, 1

</llo_original>
